<compile_context>
chip_gen: v6e
topology: v6e:2x2x1
jax: 0.10.0
libtpu: 0.0.40
codegen_flags: <defaults>
</compile_context>

<pallas_src>
import functools

import jax
import jax.numpy as jnp
from jax.experimental import pallas as pl
from jax.experimental.pallas import tpu as pltpu


# Budget for the double-buffered weight slab in VMEM (sized so the whole
# working set stays well under v7x's default 32 MiB scoped / 64 MiB physical
# per-TC VMEM; also fine on v5e/v6e).
_WEIGHT_VMEM_BUDGET = 16 * 1024 * 1024


def _round_up(x, m):
    return ((x + m - 1) // m) * m


def _pick_tiles(N, Dp, weight_vmem_budget):
    """Pick (tn, tk). tk == Dp means the full-K (single contraction) path."""
    Nr = _round_up(N, 128)
    tn = 128
    for cand in (256, 512, 1024, 2048):
        if cand > Nr:
            break
        # Keep >= 2 tiles on the parallel (output-column) axis so v7x's two
        # TensorCores both get work, whenever N allows it.
        if Nr > 128 and pl.cdiv(Nr, cand) < 2:
            break
        tn = cand
    # Full-K if the double-buffered (Dp, tn) bf16 slab fits the budget.
    if 2 * Dp * tn * 2 <= weight_vmem_budget:
        tk = Dp
    else:
        tk = max(128, min(Dp, (weight_vmem_budget // (2 * tn * 2)) // 128 * 128))
    return tn, tk


# ---------------------------------------------------------------------------
# Kernels
# ---------------------------------------------------------------------------
def _linear_full_k_kernel(x_ref, w_ref, b_ref, o_ref):
    # x_ref: (B, Dp) bf16 (resident)   w_ref: (Dp, tn) bf16
    # b_ref: (1, tn) f32               o_ref: (B, tn) f32
    o_ref[...] = (jnp.dot(x_ref[...], w_ref[...],
                          preferred_element_type=jnp.float32)
                  + b_ref[...]).astype(o_ref.dtype)


def _linear_tiled_k_kernel(x_ref, w_ref, b_ref, o_ref, *, tk):
    # Fallback for very large D. Accumulates directly into the f32 output
    # block (resident across the K axis); activations are fully resident and
    # sliced per K step.
    k = pl.program_id(1)

    @pl.when(k == 0)
    def _():
        o_ref[...] = jnp.zeros_like(o_ref)

    off = pl.multiple_of(k * tk, tk)
    o_ref[...] += jnp.dot(x_ref[:, pl.ds(off, tk)], w_ref[...],
                          preferred_element_type=jnp.float32)

    @pl.when(k == pl.num_programs(1) - 1)
    def _():
        o_ref[...] += b_ref[...]


# ---------------------------------------------------------------------------
# One-time weight preparation (do NOT call per forward)
# ---------------------------------------------------------------------------
def prepare_linear_classifier(weight, bias, *,
                              compute_dtype=jnp.bfloat16,
                              weight_vmem_budget=_WEIGHT_VMEM_BUDGET):
    """Pad, transpose to (D, N) and cast the weight once; returns params.

    compute_dtype=jnp.bfloat16 (default) halves the dominant weight HBM read
    but changes numerics vs the f32 PyTorch nn.Linear (explicit opt-in; pass
    jnp.float32 for exact-precision streams). Accumulation is always float32.
    """
    N, D = weight.shape
    assert bias.shape == (N,)
    Dp0 = _round_up(D, 128)
    tn, tk = _pick_tiles(N, Dp0, weight_vmem_budget)
    Dp = _round_up(D, tk)
    Np = _round_up(N, tn)

    w_t = jnp.zeros((Dp, Np), compute_dtype).at[:D, :N].set(
        weight.T.astype(compute_dtype))
    b_p = jnp.zeros((1, Np), jnp.float32).at[0, :N].set(
        bias.astype(jnp.float32))

    # TODO(synk): fp8 (v7x) / int8 (v5e/v6e) weight paths with per-output-
    # channel scales folded into the bias epilogue for a further ~2x on the
    # weight read are not implemented here.
    return dict(w=w_t, b=b_p, N=N, D=D, Np=Np, Dp=Dp, tn=tn, tk=tk,
                compute_dtype=compute_dtype)


# ---------------------------------------------------------------------------
# Forward
# ---------------------------------------------------------------------------
def linear_classifier_forward(x, params):
    """x: (B, ...) with prod(non-batch dims) == dim. Returns (B, num_labels) f32."""
    w, b = params["w"], params["b"]
    N, D = params["N"], params["D"]
    Np, Dp = params["Np"], params["Dp"]
    tn, tk = params["tn"], params["tk"]
    cdt = params["compute_dtype"]

    B = x.shape[0]
    x2d = x.reshape(B, -1)
    assert x2d.shape[1] == D

    # Activations are the cheap stream: pad + cast per call is negligible.
    x_p = jnp.zeros((B, Dp), cdt).at[:, :D].set(x2d.astype(cdt))

    itemsize = jnp.dtype(cdt).itemsize
    vmem_bytes = (2 * tk * tn * itemsize      # double-buffered weight slab
                  + 2 * B * Dp * itemsize     # resident activations
                  + 2 * B * tn * 4            # output block
                  + 2 * 8 * tn * 4)           # bias block (sublane-padded)
    vmem_limit = min(max(int(1.5 * vmem_bytes) + (2 << 20), 8 << 20), 32 << 20)

    if tk == Dp:
        # Full-feature contraction: 1-D grid over output-column tiles only.
        grid = (Np // tn,)
        kernel = _linear_full_k_kernel
        in_specs = [
            pl.BlockSpec((B, Dp), lambda j: (0, 0)),    # x, fully resident
            pl.BlockSpec((Dp, tn), lambda j: (0, j)),   # contiguous weight slab
            pl.BlockSpec((1, tn), lambda j: (0, j)),    # bias tile
        ]
        out_specs = pl.BlockSpec((B, tn), lambda j: (0, j))
        dims = ("parallel",)
    else:
        # Fallback for very large D: K-tiled, accumulate into the output block.
        grid = (Np // tn, Dp // tk)
        kernel = functools.partial(_linear_tiled_k_kernel, tk=tk)
        in_specs = [
            pl.BlockSpec((B, Dp), lambda j, k: (0, 0)),   # x resident across k
            pl.BlockSpec((tk, tn), lambda j, k: (k, j)),  # weight (K, N) tile
            pl.BlockSpec((1, tn), lambda j, k: (0, j)),   # bias tile
        ]
        out_specs = pl.BlockSpec((B, tn), lambda j, k: (0, j))
        dims = ("parallel", "arbitrary")

    out = pl.pallas_call(
        kernel,
        out_shape=jax.ShapeDtypeStruct((B, Np), jnp.float32),
        grid_spec=pltpu.PrefetchScalarGridSpec(
            num_scalar_prefetch=0,
            grid=grid,
            in_specs=in_specs,
            out_specs=out_specs,
        ),
        compiler_params=pltpu.CompilerParams(
            dimension_semantics=dims,
            vmem_limit_bytes=vmem_limit),
    )(x_p, w, b)

    return out[:, :N]


if __name__ == "__main__":
    # Frozen features (B, C, H, W); dim = C*H*W; realistic 1000-class head
    # (not a multiple of 128 -> exercises the padding path).
    B, C, H, W = 2, 4, 16, 16
    dim = C * H * W          # 1024
    num_labels = 1000

    key = jax.random.PRNGKey(0)
    kx, kw = jax.random.split(key)

    x = jax.random.normal(kx, (B, C, H, W), dtype=jnp.float32)
    # Deterministic init matching the module: weight ~ N(0, 0.01), bias = 0.
    weight = 0.01 * jax.random.normal(kw, (num_labels, dim), dtype=jnp.float32)
    bias = jnp.zeros((num_labels,), dtype=jnp.float32)

    # --- main path: weight prepared ONCE, full-K contiguous weight slabs ---
    params = prepare_linear_classifier(weight, bias)
    assert params["tk"] == params["Dp"]          # full-K path chosen
    assert params["Np"] // params["tn"] >= 2     # >= 2 parallel tiles (v7x)

    out = linear_classifier_forward(x, params)
    out = jax.block_until_ready(out)
    assert out.shape == (B, num_labels)
    assert out.dtype == jnp.float32

    # Reference with matching bf16 inputs / f32 accumulation (tight tolerance).
    ref_bf16 = jnp.dot(x.reshape(B, -1).astype(jnp.bfloat16),
                       weight.astype(jnp.bfloat16).T,
                       preferred_element_type=jnp.float32) + bias
    assert jnp.allclose(out, ref_bf16, atol=1e-3, rtol=1e-3)

    # Sanity vs the full-f32 PyTorch-equivalent forward (looser: bf16 streams).
    ref_f32 = x.reshape(B, -1) @ weight.T + bias
    assert jnp.allclose(out, ref_f32, atol=2e-2, rtol=2e-2)

    # --- fallback path: force K tiling with a tiny weight-VMEM budget -------
    params_tiled = prepare_linear_classifier(
        weight, bias, weight_vmem_budget=256 * 1024)
    assert params_tiled["tk"] < params_tiled["Dp"]   # K-tiled path chosen
    out_tiled = jax.block_until_ready(linear_classifier_forward(x, params_tiled))
    assert jnp.allclose(out_tiled, ref_bf16, atol=1e-3, rtol=1e-3)

    print("KERNEL_OK")
</pallas_src>

<mosaic_0001>
module attributes {stable_mosaic.version = 11 : i64} {
  func.func @_linear_full_k_kernel(%arg0: i32, %arg1: memref<2x1024xbf16, #tpu.memory_space<vmem>>, %arg2: memref<1024x512xbf16, #tpu.memory_space<vmem>>, %arg3: memref<1x512xf32, #tpu.memory_space<vmem>>, %arg4: memref<2x512xf32, #tpu.memory_space<vmem>>) attributes {dimension_semantics = [#tpu.dimension_semantics<parallel>], iteration_bounds = array<i64: 2>, scalar_prefetch = 0 : i64, scratch_operands = 0 : i64, tpu.core_type = #tpu.core_type<tc>, window_params = [{pipeline_mode = #tpu.pipeline_mode<synchronous>, transform_indices = @transform_0, window_bounds = array<i64: 2, 1024>}, {transform_indices = @transform_1, window_bounds = array<i64: 1024, 512>}, {transform_indices = @transform_2, window_bounds = array<i64: 1, 512>}, {transform_indices = @transform_3, window_bounds = array<i64: 2, 512>}]} {
    %c0 = arith.constant 0 : index
    %c0_0 = arith.constant 0 : index
    %0 = vector.load %arg1[%c0, %c0_0] : memref<2x1024xbf16, #tpu.memory_space<vmem>>, vector<2x1024xbf16>
    %c0_1 = arith.constant 0 : index
    %c0_2 = arith.constant 0 : index
    %1 = vector.load %arg2[%c0_1, %c0_2] : memref<1024x512xbf16, #tpu.memory_space<vmem>>, vector<1024x512xbf16>
    %cst = arith.constant dense<0.000000e+00> : vector<2x512xf32>
    %2 = tpu.matmul %0, %1, %cst {dimension_numbers = #tpu.dot_dimension_numbers<[1], [0], [0], [1], [0, 0, 1, 1], [], []>} : vector<2x1024xbf16>, vector<1024x512xbf16>, vector<2x512xf32> -> vector<2x512xf32>
    %c0_3 = arith.constant 0 : index
    %c0_4 = arith.constant 0 : index
    %3 = vector.load %arg3[%c0_3, %c0_4] : memref<1x512xf32, #tpu.memory_space<vmem>>, vector<1x512xf32>
    %4 = vector.broadcast %3 : vector<1x512xf32> to vector<2x512xf32>
    %5 = arith.addf %2, %4 : vector<2x512xf32>
    %c0_5 = arith.constant 0 : index
    %c0_6 = arith.constant 0 : index
    %6 = vector.load %arg4[%c0_5, %c0_6] : memref<2x512xf32, #tpu.memory_space<vmem>>, vector<2x512xf32>
    tpu.vector_store %arg4[%c0_5, %c0_6], %5 {strides = array<i32>} : memref<2x512xf32, #tpu.memory_space<vmem>>, vector<2x512xf32>,
    return
  }
  func.func @transform_0(%arg0: i32) -> (i32, i32) {
    %c0_i32 = arith.constant 0 : i32
    %c0_i32_0 = arith.constant 0 : i32
    %c0_i32_1 = arith.constant 0 : i32
    return %c0_i32, %c0_i32_0 : i32, i32
  }
  func.func @transform_1(%arg0: i32) -> (i32, i32) {
    %c0_i32 = arith.constant 0 : i32
    %c0_i32_0 = arith.constant 0 : i32
    return %c0_i32, %arg0 : i32, i32
  }
  func.func @transform_2(%arg0: i32) -> (i32, i32) {
    %c0_i32 = arith.constant 0 : i32
    %c0_i32_0 = arith.constant 0 : i32
    return %c0_i32, %arg0 : i32, i32
  }
  func.func @transform_3(%arg0: i32) -> (i32, i32) {
    %c0_i32 = arith.constant 0 : i32
    %c0_i32_0 = arith.constant 0 : i32
    return %c0_i32, %arg0 : i32, i32
  }
}

</mosaic_0001>

<llo_original>
// kernel: tpu_custom_call.1
$region0: #{tpu_custom_call.1}
  #allocation0 [shape = 'u32[]', space=smem, size = 0x4, offset = 0x4, fixed_abs, tag = 'smem constant byte address 0x4 - core index']
  #allocation1 [shape = 'u32[144,128]{1,0:T(1,128)}', space=vmem, size = 0x12000, scoped, tag = 'internal scratch']
  %s0 = inlined_call_operand.hbm [shape: bf16[2,1024], index: 0, kind: input, shape index: {}]
  %s1 = inlined_call_operand.hbm [shape: bf16[1024,1024], index: 1, kind: input, shape index: {}]
  %s2 = inlined_call_operand.hbm [shape: f32[1,1024], index: 2, kind: input, shape index: {}]
  %s3 = inlined_call_operand.hbm [shape: f32[2,1024], index: 3, kind: output, shape index: {}]
  %s4 = sld [smem:[#allocation0]]
  $region57: #{tpu_custom_call.1} parent=0
    _
  %s6 = ssub.s32 1, %s4
  %s7 = scalar_select 0, %s6, %s4
  $region1: #{tpu_custom_call.1} parent=0
    #allocation2 [shape = 'u8[4096]{0}', space=vmem, size = 0x1000, scoped, tag = 'input window, operand 0, single buffered']
    #allocation3 [shape = 's32[2]{0}', space=sflag, size = 0x8, scoped, tag = 'scoped memory for tpu_custom_call.1']
    #allocation4 [shape = 's32[2]{0}', space=sflag, size = 0x8, scoped, tag = 'scoped memory for tpu_custom_call.1']
    #allocation5 [shape = 'u8[2097152]{0}', space=vmem, size = 0x200000, scoped, tag = 'input window, operand 1']
    #allocation6 [shape = 's32[2]{0}', space=sflag, size = 0x8, scoped, tag = 'scoped memory for tpu_custom_call.1']
    #allocation7 [shape = 'u8[4096]{0}', space=vmem, size = 0x1000, scoped, tag = 'input window, operand 2']
    #allocation8 [shape = 'u8[8192]{0}', space=vmem, size = 0x2000, scoped, tag = 'output window, operand 0']
    %8 = vsyncpa [#allocation3], 0
    %9 = vsyncpa [#allocation6], 0
    %s10 = scalar_lea.sflag [#allocation6], 1
    %11 = vsyncpa %s10, 0
    %12 = vsyncpa [#allocation4], 0
    %s13 = scalar_lea.sflag [#allocation4], 1
    %14 = vsyncpa %s13, 0
    loop: start=0, step=1, limit=4
    $region2: #{tpu_custom_call.1} parent=1 // loop_pre_header
      _
    $region3: #{tpu_custom_call.1} parent=1 // loop_header
      %s16 = sphi 0, %s20
      %p17 = scmp.ge.s32.totalorder %s16, 4
      %s24 = sphi 0, %s24
      %s26 = sphi 0, %s24
      %s27 = sphi 0, %s26
      %s41 = sphi 0, %s27
      %s47 = sphi 0, %s49
      %s50 = sphi 0, %s47
      %s51 = sphi 0, %s50
      %s67 = sphi 0, %s51
      %s73 = sphi 0, %s75
      %s76 = sphi 0, %s73
      %s77 = sphi 0, %s76
      %s93 = sphi 0, %s77
      %s99 = sphi 0, %s101
      %s102 = sphi 0, %s99
      %s103 = sphi 0, %s102
      %s119 = sphi 0, %s103
    $region4: #{tpu_custom_call.1} parent=1 // loop_header_branch
      %19 = sbr.rel (%p17) target = $region8
    $region5: #{tpu_custom_call.1} parent=1 // loop_body
      %s21 = ssub.s32 %s16, 1
      %s22 = ssub.s32 %s16, 2
      %s23 = sadd.s32 %s16, 1
      %s25 = sadd.s32 %s24, 1
      %p28 = scmp.eq.s32.totalorder %s16, 1
      %p29 = scmp.ne.s32.totalorder %s24, %s26
      %p30 = scmp.eq.s32.totalorder %s16, 0
      %p31 = por %p29, %p30
      %p32 = scmp.ne.s32.totalorder %s24, %s26
      %p33 = scmp.eq.s32.totalorder %s21, 1
      %p34 = por %p32, %p33
      %p35 = scmp.ne.s32.totalorder %s26, %s27
      %p36 = scmp.eq.s32.totalorder %s21, 0
      %p37 = por %p35, %p36
      %p38 = scmp.ne.s32.totalorder %s26, %s27
      %p39 = scmp.eq.s32.totalorder %s22, 1
      %p40 = por %p38, %p39
      %p42 = scmp.ne.s32.totalorder %s27, %s41
      %p43 = scmp.eq.s32.totalorder %s22, 0
      %p44 = por %p42, %p43
      %s45 = ssub.s32 %s16, %s23
      %p46 = scmp.eq.s32.totalorder %s45, 0
      %s48 = sadd.s32 %s47, 1
      %s49 = scalar_select %p46, %s47, %s48
      %p52 = pneg %p46
      %p53 = scmp.eq.s32.totalorder %s16, 1
      %p54 = por %p52, %p53
      %p55 = scmp.ne.s32.totalorder %s47, %s50
      %p56 = scmp.eq.s32.totalorder %s16, 0
      %p57 = por %p55, %p56
      %p58 = scmp.ne.s32.totalorder %s47, %s50
      %p59 = scmp.eq.s32.totalorder %s21, 1
      %p60 = por %p58, %p59
      %p61 = scmp.ne.s32.totalorder %s50, %s51
      %p62 = scmp.eq.s32.totalorder %s21, 0
      %p63 = por %p61, %p62
      %p64 = scmp.ne.s32.totalorder %s50, %s51
      %p65 = scmp.eq.s32.totalorder %s22, 1
      %p66 = por %p64, %p65
      %p68 = scmp.ne.s32.totalorder %s51, %s67
      %p69 = scmp.eq.s32.totalorder %s22, 0
      %p70 = por %p68, %p69
      %s71 = ssub.s32 %s16, %s23
      %p72 = scmp.eq.s32.totalorder %s71, 0
      %s74 = sadd.s32 %s73, 1
      %s75 = scalar_select %p72, %s73, %s74
      %p78 = pneg %p72
      %p79 = scmp.eq.s32.totalorder %s16, 1
      %p80 = por %p78, %p79
      %p81 = scmp.ne.s32.totalorder %s73, %s76
      %p82 = scmp.eq.s32.totalorder %s16, 0
      %p83 = por %p81, %p82
      %p84 = scmp.ne.s32.totalorder %s73, %s76
      %p85 = scmp.eq.s32.totalorder %s21, 1
      %p86 = por %p84, %p85
      %p87 = scmp.ne.s32.totalorder %s76, %s77
      %p88 = scmp.eq.s32.totalorder %s21, 0
      %p89 = por %p87, %p88
      %p90 = scmp.ne.s32.totalorder %s76, %s77
      %p91 = scmp.eq.s32.totalorder %s22, 1
      %p92 = por %p90, %p91
      %p94 = scmp.ne.s32.totalorder %s77, %s93
      %p95 = scmp.eq.s32.totalorder %s22, 0
      %p96 = por %p94, %p95
      %s97 = ssub.s32 %s16, %s23
      %p98 = scmp.eq.s32.totalorder %s97, 0
      %s100 = sadd.s32 %s99, 1
      %s101 = scalar_select %p98, %s99, %s100
      %p104 = pneg %p98
      %p105 = scmp.eq.s32.totalorder %s16, 1
      %p106 = por %p104, %p105
      %p107 = scmp.ne.s32.totalorder %s99, %s102
      %p108 = scmp.eq.s32.totalorder %s16, 0
      %p109 = por %p107, %p108
      %p110 = scmp.ne.s32.totalorder %s99, %s102
      %p111 = scmp.eq.s32.totalorder %s21, 1
      %p112 = por %p110, %p111
      %p113 = scmp.ne.s32.totalorder %s102, %s103
      %p114 = scmp.eq.s32.totalorder %s21, 0
      %p115 = por %p113, %p114
      %p116 = scmp.ne.s32.totalorder %s102, %s103
      %p117 = scmp.eq.s32.totalorder %s22, 1
      %p118 = por %p116, %p117
      %p120 = scmp.ne.s32.totalorder %s103, %s119
      %p121 = scmp.eq.s32.totalorder %s22, 0
      %p122 = por %p120, %p121
      %p123 = scmp.le.s32.totalorder 1, %s16
      %p124 = scmp.lt.s32.totalorder %s16, 3
      %p125 = pnand %p123, %p124
      %p126 = pneg %p125
      // Predicated region
      $region9: #{tpu_custom_call.1} parent=5 // pred_check
        _
      $region10: #{tpu_custom_call.1} parent=5 // pred_check_branch
        %128 = sbr.rel (%p125) target = $region12
      $region11: #{tpu_custom_call.1} parent=5 // pred_region
        %s129 = ssub.s32 %s16, 1
        // Predicated region
        $region13: #{tpu_custom_call.1} parent=11 // pred_check
          %p130 = pneg %p37
        $region14: #{tpu_custom_call.1} parent=11 // pred_check_branch
          %132 = sbr.rel (%p130) target = $region16
        $region15: #{tpu_custom_call.1} parent=11 // pred_region
          %s134 = ssub.s32 128, 128
          %135 = vsyncadd [#allocation3], %s134
          %s137 = sshll.u32 [#allocation2], 4
          %s138 = int_to_ptr.vmem [resolvable:$true] %s137
          %140 = dma.hbm_to_vmem [thread:$0]  %s0, 128, %s138, [#allocation3]
        $region16: #{tpu_custom_call.1} parent=11 // pred_fallthru
          _
      $region12: #{tpu_custom_call.1} parent=5 // pred_fallthru
        _
      %p141 = scmp.lt.s32.totalorder %s16, 2
      // Predicated region
      $region17: #{tpu_custom_call.1} parent=5 // pred_check
        %p142 = pneg %p141
      $region18: #{tpu_custom_call.1} parent=5 // pred_check_branch
        %144 = sbr.rel (%p142) target = $region20
      $region19: #{tpu_custom_call.1} parent=5 // pred_region
        // Predicated region
        $region21: #{tpu_custom_call.1} parent=19 // pred_check
          %p145 = pneg %p57
        $region22: #{tpu_custom_call.1} parent=19 // pred_check_branch
          %147 = sbr.rel (%p145) target = $region24
        $region23: #{tpu_custom_call.1} parent=19 // pred_region
          %s148 = sand.u32 %s16, 1
          %s149 = scalar_lea.sflag [#allocation6], %s148
          %s150 = sand.u32 %s47, 1
          %s151 = smul.addr %s150, 2048
          %s152 = scalar_lea.vmem [#allocation5], %s151
          %s153 = smul.u32 4, %s16
          %s155 = ssub.s32 32768, 32768
          %156 = vsyncadd %s149, %s155
          %s157 = smul.addr %s153, 64
          %s158 = scalar_lea.hbm %s1, %s157
          %s159 = sshll.u32 %s152, 4
          %s160 = int_to_ptr.vmem [resolvable:$true] %s159
          %165 = dma.hbm_to_vmem [thread:$0]  %s158, 32768, %s160, %s149, 512, 256, 16
        $region24: #{tpu_custom_call.1} parent=19 // pred_fallthru
          _
        // Predicated region
        $region25: #{tpu_custom_call.1} parent=19 // pred_check
          %p166 = pneg %p83
        $region26: #{tpu_custom_call.1} parent=19 // pred_check_branch
          %168 = sbr.rel (%p166) target = $region28
        $region27: #{tpu_custom_call.1} parent=19 // pred_region
          %s169 = sand.u32 %s16, 1
          %s170 = scalar_lea.sflag [#allocation6], %s169
          %s171 = sand.u32 %s73, 1
          %s172 = smul.addr %s171, 4
          %s173 = scalar_lea.vmem [#allocation7], %s172
          %s174 = smul.u32 4, %s16
          %s176 = ssub.s32 64, 64
          %177 = vsyncadd %s170, %s176
          %s178 = smul.addr %s174, 16
          %s179 = scalar_lea.hbm %s2, %s178
          %s181 = sshll.u32 %s173, 4
          %s182 = int_to_ptr.vmem [resolvable:$true] %s181
          %184 = dma.hbm_to_vmem [thread:$0]  %s179, 64, %s182, %s170
        $region28: #{tpu_custom_call.1} parent=19 // pred_fallthru
          _
      $region20: #{tpu_custom_call.1} parent=5 // pred_fallthru
        _
      %p185 = scmp.le.s32.totalorder 1, %s16
      %p186 = scmp.lt.s32.totalorder %s16, 3
      %p187 = pnand %p185, %p186
      %p188 = pneg %p187
      // Predicated region
      $region29: #{tpu_custom_call.1} parent=5 // pred_check
        _
      $region30: #{tpu_custom_call.1} parent=5 // pred_check_branch
        %190 = sbr.rel (%p187) target = $region32
      $region31: #{tpu_custom_call.1} parent=5 // pred_region
        %s191 = ssub.s32 %s16, 1
        // Predicated region
        $region33: #{tpu_custom_call.1} parent=31 // pred_check
          %p192 = pneg %p37
        $region34: #{tpu_custom_call.1} parent=31 // pred_check_branch
          %194 = sbr.rel (%p192) target = $region36
        $region35: #{tpu_custom_call.1} parent=31 // pred_region
          %195 = dma.done [#allocation3], 128
        $region36: #{tpu_custom_call.1} parent=31 // pred_fallthru
          _
        %s196 = sand.u32 %s21, 1
        %s197 = scalar_lea.sflag [#allocation6], %s196
        %s198 = sand.u32 %s50, 1
        %s199 = smul.addr %s198, 2048
        %s200 = scalar_lea.vmem [#allocation5], %s199
        // Predicated region
        $region37: #{tpu_custom_call.1} parent=31 // pred_check
          %p201 = pneg %p63
        $region38: #{tpu_custom_call.1} parent=31 // pred_check_branch
          %203 = sbr.rel (%p201) target = $region40
        $region39: #{tpu_custom_call.1} parent=31 // pred_region
          %204 = dma.done %s197, 32768
        $region40: #{tpu_custom_call.1} parent=31 // pred_fallthru
          _
        %s205 = sand.u32 %s21, 1
        %s206 = scalar_lea.sflag [#allocation6], %s205
        %s207 = sand.u32 %s76, 1
        %s208 = smul.addr %s207, 4
        %s209 = scalar_lea.vmem [#allocation7], %s208
        // Predicated region
        $region41: #{tpu_custom_call.1} parent=31 // pred_check
          %p210 = pneg %p89
        $region42: #{tpu_custom_call.1} parent=31 // pred_check_branch
          %212 = sbr.rel (%p210) target = $region44
        $region43: #{tpu_custom_call.1} parent=31 // pred_region
          %213 = dma.done %s206, 64
        $region44: #{tpu_custom_call.1} parent=31 // pred_fallthru
          _
        %p214 = pneg %p37
        %p215 = pneg %p34
        %s216 = sand.u32 %s21, 1
        %s217 = scalar_lea.sflag [#allocation6], %s216
        %s218 = sand.u32 %s50, 1
        %s219 = smul.addr %s218, 2048
        %s220 = scalar_lea.vmem [#allocation5], %s219
        %p221 = pneg %p63
        %p222 = pneg %p60
        %s223 = sand.u32 %s21, 1
        %s224 = scalar_lea.sflag [#allocation6], %s223
        %s225 = sand.u32 %s76, 1
        %s226 = smul.addr %s225, 4
        %s227 = scalar_lea.vmem [#allocation7], %s226
        %p228 = pneg %p89
        %p229 = pneg %p86
        %p230 = pneg %p115
        %p231 = pneg %p112
        %s232 = sand.u32 %s102, 1
        %s233 = scalar_lea.sflag [#allocation4], %s232
        %s234 = sand.u32 %s102, 1
        %s235 = smul.addr %s234, 8
        %s236 = scalar_lea.vmem [#allocation8], %s235
        %s237 = smul.u32 4, %s21
        %s238 = smul.u32 4, %s21
        %s239 = smul.u32 4, %s21
        %v240 = vld [vmem:[#allocation2] sm:$0xff]
        %v241 = vld [vmem:[%s200] sm:$0xff]
        %v242 = vld [vmem:[%s200 + $0x8] sm:$0xff]
        %v243 = vld [vmem:[%s200 + $0x10] sm:$0xff]
        %v244 = vld [vmem:[%s200 + $0x18] sm:$0xff]
        %v245 = vld [vmem:[%s200 + $0x20] sm:$0xff]
        %v246 = vld [vmem:[%s200 + $0x28] sm:$0xff]
        %v247 = vld [vmem:[%s200 + $0x30] sm:$0xff]
        %v248 = vld [vmem:[%s200 + $0x38] sm:$0xff]
        %v249 = vld [vmem:[%s200 + $0x40] sm:$0xff]
        %v250 = vld [vmem:[%s200 + $0x48] sm:$0xff]
        %v251 = vld [vmem:[%s200 + $0x50] sm:$0xff]
        %v252 = vld [vmem:[%s200 + $0x58] sm:$0xff]
        %v253 = vld [vmem:[%s200 + $0x60] sm:$0xff]
        %v254 = vld [vmem:[%s200 + $0x68] sm:$0xff]
        %v255 = vld [vmem:[%s200 + $0x70] sm:$0xff]
        %v256 = vld [vmem:[%s200 + $0x78] sm:$0xff]
        %v257 = vld [vmem:[%s200 + $0x80] sm:$0xff]
        %v258 = vld [vmem:[%s200 + $0x88] sm:$0xff]
        %v259 = vld [vmem:[%s200 + $0x90] sm:$0xff]
        %v260 = vld [vmem:[%s200 + $0x98] sm:$0xff]
        %v261 = vld [vmem:[%s200 + $0xa0] sm:$0xff]
        %v262 = vld [vmem:[%s200 + $0xa8] sm:$0xff]
        %v263 = vld [vmem:[%s200 + $0xb0] sm:$0xff]
        %v264 = vld [vmem:[%s200 + $0xb8] sm:$0xff]
        %v265 = vld [vmem:[%s200 + $0xc0] sm:$0xff]
        %v266 = vld [vmem:[%s200 + $0xc8] sm:$0xff]
        %v267 = vld [vmem:[%s200 + $0xd0] sm:$0xff]
        %v268 = vld [vmem:[%s200 + $0xd8] sm:$0xff]
        %v269 = vld [vmem:[%s200 + $0xe0] sm:$0xff]
        %v270 = vld [vmem:[%s200 + $0xe8] sm:$0xff]
        %v271 = vld [vmem:[%s200 + $0xf0] sm:$0xff]
        %v272 = vld [vmem:[%s200 + $0xf8] sm:$0xff]
        %v273 = vld [vmem:[%s200 + $0x100] sm:$0xff]
        %v274 = vld [vmem:[%s200 + $0x108] sm:$0xff]
        %v275 = vld [vmem:[%s200 + $0x110] sm:$0xff]
        %v276 = vld [vmem:[%s200 + $0x118] sm:$0xff]
        %v277 = vld [vmem:[%s200 + $0x120] sm:$0xff]
        %v278 = vld [vmem:[%s200 + $0x128] sm:$0xff]
        %v279 = vld [vmem:[%s200 + $0x130] sm:$0xff]
        %v280 = vld [vmem:[%s200 + $0x138] sm:$0xff]
        %v281 = vld [vmem:[%s200 + $0x140] sm:$0xff]
        %v282 = vld [vmem:[%s200 + $0x148] sm:$0xff]
        %v283 = vld [vmem:[%s200 + $0x150] sm:$0xff]
        %v284 = vld [vmem:[%s200 + $0x158] sm:$0xff]
        %v285 = vld [vmem:[%s200 + $0x160] sm:$0xff]
        %v286 = vld [vmem:[%s200 + $0x168] sm:$0xff]
        %v287 = vld [vmem:[%s200 + $0x170] sm:$0xff]
        %v288 = vld [vmem:[%s200 + $0x178] sm:$0xff]
        %v289 = vld [vmem:[%s200 + $0x180] sm:$0xff]
        %v290 = vld [vmem:[%s200 + $0x188] sm:$0xff]
        %v291 = vld [vmem:[%s200 + $0x190] sm:$0xff]
        %v292 = vld [vmem:[%s200 + $0x198] sm:$0xff]
        %v293 = vld [vmem:[%s200 + $0x1a0] sm:$0xff]
        %v294 = vld [vmem:[%s200 + $0x1a8] sm:$0xff]
        %v295 = vld [vmem:[%s200 + $0x1b0] sm:$0xff]
        %v296 = vld [vmem:[%s200 + $0x1b8] sm:$0xff]
        %v297 = vld [vmem:[%s200 + $0x1c0] sm:$0xff]
        %v298 = vld [vmem:[%s200 + $0x1c8] sm:$0xff]
        %v299 = vld [vmem:[%s200 + $0x1d0] sm:$0xff]
        %v300 = vld [vmem:[%s200 + $0x1d8] sm:$0xff]
        %v301 = vld [vmem:[%s200 + $0x1e0] sm:$0xff]
        %v302 = vld [vmem:[%s200 + $0x1e8] sm:$0xff]
        %v303 = vld [vmem:[%s200 + $0x1f0] sm:$0xff]
        %v304 = vld [vmem:[%s200 + $0x1f8] sm:$0xff]
        %v305 = vld [vmem:[%s200 + $0x200] sm:$0xff]
        %v306 = vld [vmem:[%s200 + $0x208] sm:$0xff]
        %v307 = vld [vmem:[%s200 + $0x210] sm:$0xff]
        %v308 = vld [vmem:[%s200 + $0x218] sm:$0xff]
        %v309 = vld [vmem:[%s200 + $0x220] sm:$0xff]
        %v310 = vld [vmem:[%s200 + $0x228] sm:$0xff]
        %v311 = vld [vmem:[%s200 + $0x230] sm:$0xff]
        %v312 = vld [vmem:[%s200 + $0x238] sm:$0xff]
        %v313 = vld [vmem:[%s200 + $0x240] sm:$0xff]
        %v314 = vld [vmem:[%s200 + $0x248] sm:$0xff]
        %v315 = vld [vmem:[%s200 + $0x250] sm:$0xff]
        %v316 = vld [vmem:[%s200 + $0x258] sm:$0xff]
        %v317 = vld [vmem:[%s200 + $0x260] sm:$0xff]
        %v318 = vld [vmem:[%s200 + $0x268] sm:$0xff]
        %v319 = vld [vmem:[%s200 + $0x270] sm:$0xff]
        %v320 = vld [vmem:[%s200 + $0x278] sm:$0xff]
        %v321 = vld [vmem:[%s200 + $0x280] sm:$0xff]
        %v322 = vld [vmem:[%s200 + $0x288] sm:$0xff]
        %v323 = vld [vmem:[%s200 + $0x290] sm:$0xff]
        %v324 = vld [vmem:[%s200 + $0x298] sm:$0xff]
        %v325 = vld [vmem:[%s200 + $0x2a0] sm:$0xff]
        %v326 = vld [vmem:[%s200 + $0x2a8] sm:$0xff]
        %v327 = vld [vmem:[%s200 + $0x2b0] sm:$0xff]
        %v328 = vld [vmem:[%s200 + $0x2b8] sm:$0xff]
        %v329 = vld [vmem:[%s200 + $0x2c0] sm:$0xff]
        %v330 = vld [vmem:[%s200 + $0x2c8] sm:$0xff]
        %v331 = vld [vmem:[%s200 + $0x2d0] sm:$0xff]
        %v332 = vld [vmem:[%s200 + $0x2d8] sm:$0xff]
        %v333 = vld [vmem:[%s200 + $0x2e0] sm:$0xff]
        %v334 = vld [vmem:[%s200 + $0x2e8] sm:$0xff]
        %v335 = vld [vmem:[%s200 + $0x2f0] sm:$0xff]
        %v336 = vld [vmem:[%s200 + $0x2f8] sm:$0xff]
        %v337 = vld [vmem:[%s200 + $0x300] sm:$0xff]
        %v338 = vld [vmem:[%s200 + $0x308] sm:$0xff]
        %v339 = vld [vmem:[%s200 + $0x310] sm:$0xff]
        %v340 = vld [vmem:[%s200 + $0x318] sm:$0xff]
        %v341 = vld [vmem:[%s200 + $0x320] sm:$0xff]
        %v342 = vld [vmem:[%s200 + $0x328] sm:$0xff]
        %v343 = vld [vmem:[%s200 + $0x330] sm:$0xff]
        %v344 = vld [vmem:[%s200 + $0x338] sm:$0xff]
        %v345 = vld [vmem:[%s200 + $0x340] sm:$0xff]
        %v346 = vld [vmem:[%s200 + $0x348] sm:$0xff]
        %v347 = vld [vmem:[%s200 + $0x350] sm:$0xff]
        %v348 = vld [vmem:[%s200 + $0x358] sm:$0xff]
        %v349 = vld [vmem:[%s200 + $0x360] sm:$0xff]
        %v350 = vld [vmem:[%s200 + $0x368] sm:$0xff]
        %v351 = vld [vmem:[%s200 + $0x370] sm:$0xff]
        %v352 = vld [vmem:[%s200 + $0x378] sm:$0xff]
        %v353 = vld [vmem:[%s200 + $0x380] sm:$0xff]
        %v354 = vld [vmem:[%s200 + $0x388] sm:$0xff]
        %v355 = vld [vmem:[%s200 + $0x390] sm:$0xff]
        %v356 = vld [vmem:[%s200 + $0x398] sm:$0xff]
        %v357 = vld [vmem:[%s200 + $0x3a0] sm:$0xff]
        %v358 = vld [vmem:[%s200 + $0x3a8] sm:$0xff]
        %v359 = vld [vmem:[%s200 + $0x3b0] sm:$0xff]
        %v360 = vld [vmem:[%s200 + $0x3b8] sm:$0xff]
        %v361 = vld [vmem:[%s200 + $0x3c0] sm:$0xff]
        %v362 = vld [vmem:[%s200 + $0x3c8] sm:$0xff]
        %v363 = vld [vmem:[%s200 + $0x3d0] sm:$0xff]
        %v364 = vld [vmem:[%s200 + $0x3d8] sm:$0xff]
        %v365 = vld [vmem:[%s200 + $0x3e0] sm:$0xff]
        %v366 = vld [vmem:[%s200 + $0x3e8] sm:$0xff]
        %v367 = vld [vmem:[%s200 + $0x3f0] sm:$0xff]
        %v368 = vld [vmem:[%s200 + $0x3f8] sm:$0xff]
        %v369 = vld [vmem:[%s200 + $0x400] sm:$0xff]
        %v370 = vld [vmem:[%s200 + $0x408] sm:$0xff]
        %v371 = vld [vmem:[%s200 + $0x410] sm:$0xff]
        %v372 = vld [vmem:[%s200 + $0x418] sm:$0xff]
        %v373 = vld [vmem:[%s200 + $0x420] sm:$0xff]
        %v374 = vld [vmem:[%s200 + $0x428] sm:$0xff]
        %v375 = vld [vmem:[%s200 + $0x430] sm:$0xff]
        %v376 = vld [vmem:[%s200 + $0x438] sm:$0xff]
        %v377 = vld [vmem:[%s200 + $0x440] sm:$0xff]
        %v378 = vld [vmem:[%s200 + $0x448] sm:$0xff]
        %v379 = vld [vmem:[%s200 + $0x450] sm:$0xff]
        %v380 = vld [vmem:[%s200 + $0x458] sm:$0xff]
        %v381 = vld [vmem:[%s200 + $0x460] sm:$0xff]
        %v382 = vld [vmem:[%s200 + $0x468] sm:$0xff]
        %v383 = vld [vmem:[%s200 + $0x470] sm:$0xff]
        %v384 = vld [vmem:[%s200 + $0x478] sm:$0xff]
        %v385 = vld [vmem:[%s200 + $0x480] sm:$0xff]
        %v386 = vld [vmem:[%s200 + $0x488] sm:$0xff]
        %v387 = vld [vmem:[%s200 + $0x490] sm:$0xff]
        %v388 = vld [vmem:[%s200 + $0x498] sm:$0xff]
        %v389 = vld [vmem:[%s200 + $0x4a0] sm:$0xff]
        %v390 = vld [vmem:[%s200 + $0x4a8] sm:$0xff]
        %v391 = vld [vmem:[%s200 + $0x4b0] sm:$0xff]
        %v392 = vld [vmem:[%s200 + $0x4b8] sm:$0xff]
        %v393 = vld [vmem:[%s200 + $0x4c0] sm:$0xff]
        %v394 = vld [vmem:[%s200 + $0x4c8] sm:$0xff]
        %v395 = vld [vmem:[%s200 + $0x4d0] sm:$0xff]
        %v396 = vld [vmem:[%s200 + $0x4d8] sm:$0xff]
        %v397 = vld [vmem:[%s200 + $0x4e0] sm:$0xff]
        %v398 = vld [vmem:[%s200 + $0x4e8] sm:$0xff]
        %v399 = vld [vmem:[%s200 + $0x4f0] sm:$0xff]
        %v400 = vld [vmem:[%s200 + $0x4f8] sm:$0xff]
        %v401 = vld [vmem:[%s200 + $0x500] sm:$0xff]
        %v402 = vld [vmem:[%s200 + $0x508] sm:$0xff]
        %v403 = vld [vmem:[%s200 + $0x510] sm:$0xff]
        %v404 = vld [vmem:[%s200 + $0x518] sm:$0xff]
        %v405 = vld [vmem:[%s200 + $0x520] sm:$0xff]
        %v406 = vld [vmem:[%s200 + $0x528] sm:$0xff]
        %v407 = vld [vmem:[%s200 + $0x530] sm:$0xff]
        %v408 = vld [vmem:[%s200 + $0x538] sm:$0xff]
        %v409 = vld [vmem:[%s200 + $0x540] sm:$0xff]
        %v410 = vld [vmem:[%s200 + $0x548] sm:$0xff]
        %v411 = vld [vmem:[%s200 + $0x550] sm:$0xff]
        %v412 = vld [vmem:[%s200 + $0x558] sm:$0xff]
        %v413 = vld [vmem:[%s200 + $0x560] sm:$0xff]
        %v414 = vld [vmem:[%s200 + $0x568] sm:$0xff]
        %v415 = vld [vmem:[%s200 + $0x570] sm:$0xff]
        %v416 = vld [vmem:[%s200 + $0x578] sm:$0xff]
        %v417 = vld [vmem:[%s200 + $0x580] sm:$0xff]
        %v418 = vld [vmem:[%s200 + $0x588] sm:$0xff]
        %v419 = vld [vmem:[%s200 + $0x590] sm:$0xff]
        %v420 = vld [vmem:[%s200 + $0x598] sm:$0xff]
        %v421 = vld [vmem:[%s200 + $0x5a0] sm:$0xff]
        %v422 = vld [vmem:[%s200 + $0x5a8] sm:$0xff]
        %v423 = vld [vmem:[%s200 + $0x5b0] sm:$0xff]
        %v424 = vld [vmem:[%s200 + $0x5b8] sm:$0xff]
        %v425 = vld [vmem:[%s200 + $0x5c0] sm:$0xff]
        %v426 = vld [vmem:[%s200 + $0x5c8] sm:$0xff]
        %v427 = vld [vmem:[%s200 + $0x5d0] sm:$0xff]
        %v428 = vld [vmem:[%s200 + $0x5d8] sm:$0xff]
        %v429 = vld [vmem:[%s200 + $0x5e0] sm:$0xff]
        %v430 = vld [vmem:[%s200 + $0x5e8] sm:$0xff]
        %v431 = vld [vmem:[%s200 + $0x5f0] sm:$0xff]
        %v432 = vld [vmem:[%s200 + $0x5f8] sm:$0xff]
        %v433 = vld [vmem:[%s200 + $0x600] sm:$0xff]
        %v434 = vld [vmem:[%s200 + $0x608] sm:$0xff]
        %v435 = vld [vmem:[%s200 + $0x610] sm:$0xff]
        %v436 = vld [vmem:[%s200 + $0x618] sm:$0xff]
        %v437 = vld [vmem:[%s200 + $0x620] sm:$0xff]
        %v438 = vld [vmem:[%s200 + $0x628] sm:$0xff]
        %v439 = vld [vmem:[%s200 + $0x630] sm:$0xff]
        %v440 = vld [vmem:[%s200 + $0x638] sm:$0xff]
        %v441 = vld [vmem:[%s200 + $0x640] sm:$0xff]
        %v442 = vld [vmem:[%s200 + $0x648] sm:$0xff]
        %v443 = vld [vmem:[%s200 + $0x650] sm:$0xff]
        %v444 = vld [vmem:[%s200 + $0x658] sm:$0xff]
        %v445 = vld [vmem:[%s200 + $0x660] sm:$0xff]
        %v446 = vld [vmem:[%s200 + $0x668] sm:$0xff]
        %v447 = vld [vmem:[%s200 + $0x670] sm:$0xff]
        %v448 = vld [vmem:[%s200 + $0x678] sm:$0xff]
        %v449 = vld [vmem:[%s200 + $0x680] sm:$0xff]
        %v450 = vld [vmem:[%s200 + $0x688] sm:$0xff]
        %v451 = vld [vmem:[%s200 + $0x690] sm:$0xff]
        %v452 = vld [vmem:[%s200 + $0x698] sm:$0xff]
        %v453 = vld [vmem:[%s200 + $0x6a0] sm:$0xff]
        %v454 = vld [vmem:[%s200 + $0x6a8] sm:$0xff]
        %v455 = vld [vmem:[%s200 + $0x6b0] sm:$0xff]
        %v456 = vld [vmem:[%s200 + $0x6b8] sm:$0xff]
        %v457 = vld [vmem:[%s200 + $0x6c0] sm:$0xff]
        %v458 = vld [vmem:[%s200 + $0x6c8] sm:$0xff]
        %v459 = vld [vmem:[%s200 + $0x6d0] sm:$0xff]
        %v460 = vld [vmem:[%s200 + $0x6d8] sm:$0xff]
        %v461 = vld [vmem:[%s200 + $0x6e0] sm:$0xff]
        %v462 = vld [vmem:[%s200 + $0x6e8] sm:$0xff]
        %v463 = vld [vmem:[%s200 + $0x6f0] sm:$0xff]
        %v464 = vld [vmem:[%s200 + $0x6f8] sm:$0xff]
        %v465 = vld [vmem:[%s200 + $0x700] sm:$0xff]
        %v466 = vld [vmem:[%s200 + $0x708] sm:$0xff]
        %v467 = vld [vmem:[%s200 + $0x710] sm:$0xff]
        %v468 = vld [vmem:[%s200 + $0x718] sm:$0xff]
        %v469 = vld [vmem:[%s200 + $0x720] sm:$0xff]
        %v470 = vld [vmem:[%s200 + $0x728] sm:$0xff]
        %v471 = vld [vmem:[%s200 + $0x730] sm:$0xff]
        %v472 = vld [vmem:[%s200 + $0x738] sm:$0xff]
        %v473 = vld [vmem:[%s200 + $0x740] sm:$0xff]
        %v474 = vld [vmem:[%s200 + $0x748] sm:$0xff]
        %v475 = vld [vmem:[%s200 + $0x750] sm:$0xff]
        %v476 = vld [vmem:[%s200 + $0x758] sm:$0xff]
        %v477 = vld [vmem:[%s200 + $0x760] sm:$0xff]
        %v478 = vld [vmem:[%s200 + $0x768] sm:$0xff]
        %v479 = vld [vmem:[%s200 + $0x770] sm:$0xff]
        %v480 = vld [vmem:[%s200 + $0x778] sm:$0xff]
        %v481 = vld [vmem:[%s200 + $0x780] sm:$0xff]
        %v482 = vld [vmem:[%s200 + $0x788] sm:$0xff]
        %v483 = vld [vmem:[%s200 + $0x790] sm:$0xff]
        %v484 = vld [vmem:[%s200 + $0x798] sm:$0xff]
        %v485 = vld [vmem:[%s200 + $0x7a0] sm:$0xff]
        %v486 = vld [vmem:[%s200 + $0x7a8] sm:$0xff]
        %v487 = vld [vmem:[%s200 + $0x7b0] sm:$0xff]
        %v488 = vld [vmem:[%s200 + $0x7b8] sm:$0xff]
        %v489 = vld [vmem:[%s200 + $0x7c0] sm:$0xff]
        %v490 = vld [vmem:[%s200 + $0x7c8] sm:$0xff]
        %v491 = vld [vmem:[%s200 + $0x7d0] sm:$0xff]
        %v492 = vld [vmem:[%s200 + $0x7d8] sm:$0xff]
        %v493 = vld [vmem:[%s200 + $0x7e0] sm:$0xff]
        %v494 = vld [vmem:[%s200 + $0x7e8] sm:$0xff]
        %v495 = vld [vmem:[%s200 + $0x7f0] sm:$0xff]
        %v496 = vld [vmem:[%s200 + $0x7f8] sm:$0xff]
        %v497 = vld [vmem:[%s209] sm:$0xf]
        %v499 = vlaneseq
        %v500 = vshrl.u32 %v499, 7
        %v501 = vsub.s32 0, %v500
        %v502 = vrot.slane %v497, %v501
        %v503 = vlaneseq
        %v504 = vshrl.u32 %v503, 7
        %v505 = vsub.s32 1, %v504
        %v506 = vrot.slane %v497, %v505
        %v507 = vlaneseq
        %v508 = vshrl.u32 %v507, 7
        %v509 = vsub.s32 2, %v508
        %v510 = vrot.slane %v497, %v509
        %v511 = vlaneseq
        %v512 = vshrl.u32 %v511, 7
        %v513 = vsub.s32 3, %v512
        %v514 = vrot.slane %v497, %v513
        %v520 = vcombine.high %v240, %v240
        %v522 = vunpack.c.l.s4 1966171168
        %v523 = vunpack.c.0.s8 %v522
        %v524 = vlaneseq
        %v525 = vshrl.u32 %v524, 7
        %v526 = vsub.s32 %v523, %v525
        %v527 = vrot.slane %v240, %v526
        %v529 = vunpack.c.l.s4 1966171168
        %v530 = vunpack.c.0.s8 %v529
        %v531 = vlaneseq
        %v532 = vshrl.u32 %v531, 7
        %v533 = vsub.s32 %v530, %v532
        %v534 = vrot.slane %v520, %v533
        %v535 = vcombine.high %v527, %v527
        %v536 = vcombine.high %v534, %v534
        %v538 = vunpack.c.l.s4 1966171168
        %v539 = vunpack.c.0.s8 %v538
        %v540 = vlaneseq
        %v541 = vshrl.u32 %v540, 7
        %v542 = vsub.s32 %v539, %v541
        %v543 = vrot.slane %v527, %v542
        %v545 = vunpack.c.l.s4 1966171168
        %v546 = vunpack.c.0.s8 %v545
        %v547 = vlaneseq
        %v548 = vshrl.u32 %v547, 7
        %v549 = vsub.s32 %v546, %v548
        %v550 = vrot.slane %v534, %v549
        %v552 = vunpack.c.l.s4 1966171168
        %v553 = vunpack.c.0.s8 %v552
        %v554 = vlaneseq
        %v555 = vshrl.u32 %v554, 7
        %v556 = vsub.s32 %v553, %v555
        %v557 = vrot.slane %v535, %v556
        %v559 = vunpack.c.l.s4 1966171168
        %v560 = vunpack.c.0.s8 %v559
        %v561 = vlaneseq
        %v562 = vshrl.u32 %v561, 7
        %v563 = vsub.s32 %v560, %v562
        %v564 = vrot.slane %v536, %v563
        %v565 = vcombine.high %v543, %v543
        %v566 = vcombine.high %v550, %v550
        %v567 = vcombine.high %v557, %v557
        %v568 = vcombine.high %v564, %v564
        %v833 = vunpack.c.l.b16 %v241
        %v834 = vunpack.c.h.b16 %v241
        %v835 = vunpack.c.l.b16 %v242
        %v836 = vunpack.c.h.b16 %v242
        %v837 = vunpack.c.l.b16 %v243
        %v838 = vunpack.c.h.b16 %v243
        %v839 = vunpack.c.l.b16 %v244
        %v840 = vunpack.c.h.b16 %v244
        %v841 = vunpack.c.l.b16 %v245
        %v842 = vunpack.c.h.b16 %v245
        %v843 = vunpack.c.l.b16 %v246
        %v844 = vunpack.c.h.b16 %v246
        %v845 = vunpack.c.l.b16 %v247
        %v846 = vunpack.c.h.b16 %v247
        %v847 = vunpack.c.l.b16 %v248
        %v848 = vunpack.c.h.b16 %v248
        %v849 = vunpack.c.l.b16 %v249
        %v850 = vunpack.c.h.b16 %v249
        %v851 = vunpack.c.l.b16 %v250
        %v852 = vunpack.c.h.b16 %v250
        %v853 = vunpack.c.l.b16 %v251
        %v854 = vunpack.c.h.b16 %v251
        %v855 = vunpack.c.l.b16 %v252
        %v856 = vunpack.c.h.b16 %v252
        %v857 = vunpack.c.l.b16 %v253
        %v858 = vunpack.c.h.b16 %v253
        %v859 = vunpack.c.l.b16 %v254
        %v860 = vunpack.c.h.b16 %v254
        %v861 = vunpack.c.l.b16 %v255
        %v862 = vunpack.c.h.b16 %v255
        %v863 = vunpack.c.l.b16 %v256
        %v864 = vunpack.c.h.b16 %v256
        %v865 = vunpack.c.l.b16 %v257
        %v866 = vunpack.c.h.b16 %v257
        %v867 = vunpack.c.l.b16 %v258
        %v868 = vunpack.c.h.b16 %v258
        %v869 = vunpack.c.l.b16 %v259
        %v870 = vunpack.c.h.b16 %v259
        %v871 = vunpack.c.l.b16 %v260
        %v872 = vunpack.c.h.b16 %v260
        %v873 = vunpack.c.l.b16 %v261
        %v874 = vunpack.c.h.b16 %v261
        %v875 = vunpack.c.l.b16 %v262
        %v876 = vunpack.c.h.b16 %v262
        %v877 = vunpack.c.l.b16 %v263
        %v878 = vunpack.c.h.b16 %v263
        %v879 = vunpack.c.l.b16 %v264
        %v880 = vunpack.c.h.b16 %v264
        %v881 = vunpack.c.l.b16 %v265
        %v882 = vunpack.c.h.b16 %v265
        %v883 = vunpack.c.l.b16 %v266
        %v884 = vunpack.c.h.b16 %v266
        %v885 = vunpack.c.l.b16 %v267
        %v886 = vunpack.c.h.b16 %v267
        %v887 = vunpack.c.l.b16 %v268
        %v888 = vunpack.c.h.b16 %v268
        %v889 = vunpack.c.l.b16 %v269
        %v890 = vunpack.c.h.b16 %v269
        %v891 = vunpack.c.l.b16 %v270
        %v892 = vunpack.c.h.b16 %v270
        %v893 = vunpack.c.l.b16 %v271
        %v894 = vunpack.c.h.b16 %v271
        %v895 = vunpack.c.l.b16 %v272
        %v896 = vunpack.c.h.b16 %v272
        %v897 = vunpack.c.l.b16 %v273
        %v898 = vunpack.c.h.b16 %v273
        %v899 = vunpack.c.l.b16 %v274
        %v900 = vunpack.c.h.b16 %v274
        %v901 = vunpack.c.l.b16 %v275
        %v902 = vunpack.c.h.b16 %v275
        %v903 = vunpack.c.l.b16 %v276
        %v904 = vunpack.c.h.b16 %v276
        %v905 = vunpack.c.l.b16 %v277
        %v906 = vunpack.c.h.b16 %v277
        %v907 = vunpack.c.l.b16 %v278
        %v908 = vunpack.c.h.b16 %v278
        %v909 = vunpack.c.l.b16 %v279
        %v910 = vunpack.c.h.b16 %v279
        %v911 = vunpack.c.l.b16 %v280
        %v912 = vunpack.c.h.b16 %v280
        %v913 = vunpack.c.l.b16 %v281
        %v914 = vunpack.c.h.b16 %v281
        %v915 = vunpack.c.l.b16 %v282
        %v916 = vunpack.c.h.b16 %v282
        %v917 = vunpack.c.l.b16 %v283
        %v918 = vunpack.c.h.b16 %v283
        %v919 = vunpack.c.l.b16 %v284
        %v920 = vunpack.c.h.b16 %v284
        %v921 = vunpack.c.l.b16 %v285
        %v922 = vunpack.c.h.b16 %v285
        %v923 = vunpack.c.l.b16 %v286
        %v924 = vunpack.c.h.b16 %v286
        %v925 = vunpack.c.l.b16 %v287
        %v926 = vunpack.c.h.b16 %v287
        %v927 = vunpack.c.l.b16 %v288
        %v928 = vunpack.c.h.b16 %v288
        %v929 = vunpack.c.l.b16 %v289
        %v930 = vunpack.c.h.b16 %v289
        %v931 = vunpack.c.l.b16 %v290
        %v932 = vunpack.c.h.b16 %v290
        %v933 = vunpack.c.l.b16 %v291
        %v934 = vunpack.c.h.b16 %v291
        %v935 = vunpack.c.l.b16 %v292
        %v936 = vunpack.c.h.b16 %v292
        %v937 = vunpack.c.l.b16 %v293
        %v938 = vunpack.c.h.b16 %v293
        %v939 = vunpack.c.l.b16 %v294
        %v940 = vunpack.c.h.b16 %v294
        %v941 = vunpack.c.l.b16 %v295
        %v942 = vunpack.c.h.b16 %v295
        %v943 = vunpack.c.l.b16 %v296
        %v944 = vunpack.c.h.b16 %v296
        %v945 = vunpack.c.l.b16 %v297
        %v946 = vunpack.c.h.b16 %v297
        %v947 = vunpack.c.l.b16 %v298
        %v948 = vunpack.c.h.b16 %v298
        %v949 = vunpack.c.l.b16 %v299
        %v950 = vunpack.c.h.b16 %v299
        %v951 = vunpack.c.l.b16 %v300
        %v952 = vunpack.c.h.b16 %v300
        %v953 = vunpack.c.l.b16 %v301
        %v954 = vunpack.c.h.b16 %v301
        %v955 = vunpack.c.l.b16 %v302
        %v956 = vunpack.c.h.b16 %v302
        %v957 = vunpack.c.l.b16 %v303
        %v958 = vunpack.c.h.b16 %v303
        %v959 = vunpack.c.l.b16 %v304
        %v960 = vunpack.c.h.b16 %v304
        %v961 = vunpack.c.l.b16 %v305
        %v962 = vunpack.c.h.b16 %v305
        %v963 = vunpack.c.l.b16 %v306
        %v964 = vunpack.c.h.b16 %v306
        %v965 = vunpack.c.l.b16 %v307
        %v966 = vunpack.c.h.b16 %v307
        %v967 = vunpack.c.l.b16 %v308
        %v968 = vunpack.c.h.b16 %v308
        %v969 = vunpack.c.l.b16 %v309
        %v970 = vunpack.c.h.b16 %v309
        %v971 = vunpack.c.l.b16 %v310
        %v972 = vunpack.c.h.b16 %v310
        %v973 = vunpack.c.l.b16 %v311
        %v974 = vunpack.c.h.b16 %v311
        %v975 = vunpack.c.l.b16 %v312
        %v976 = vunpack.c.h.b16 %v312
        %v977 = vunpack.c.l.b16 %v313
        %v978 = vunpack.c.h.b16 %v313
        %v979 = vunpack.c.l.b16 %v314
        %v980 = vunpack.c.h.b16 %v314
        %v981 = vunpack.c.l.b16 %v315
        %v982 = vunpack.c.h.b16 %v315
        %v983 = vunpack.c.l.b16 %v316
        %v984 = vunpack.c.h.b16 %v316
        %v985 = vunpack.c.l.b16 %v317
        %v986 = vunpack.c.h.b16 %v317
        %v987 = vunpack.c.l.b16 %v318
        %v988 = vunpack.c.h.b16 %v318
        %v989 = vunpack.c.l.b16 %v319
        %v990 = vunpack.c.h.b16 %v319
        %v991 = vunpack.c.l.b16 %v320
        %v992 = vunpack.c.h.b16 %v320
        %v993 = vunpack.c.l.b16 %v321
        %v994 = vunpack.c.h.b16 %v321
        %v995 = vunpack.c.l.b16 %v322
        %v996 = vunpack.c.h.b16 %v322
        %v997 = vunpack.c.l.b16 %v323
        %v998 = vunpack.c.h.b16 %v323
        %v999 = vunpack.c.l.b16 %v324
        %v1000 = vunpack.c.h.b16 %v324
        %v1001 = vunpack.c.l.b16 %v325
        %v1002 = vunpack.c.h.b16 %v325
        %v1003 = vunpack.c.l.b16 %v326
        %v1004 = vunpack.c.h.b16 %v326
        %v1005 = vunpack.c.l.b16 %v327
        %v1006 = vunpack.c.h.b16 %v327
        %v1007 = vunpack.c.l.b16 %v328
        %v1008 = vunpack.c.h.b16 %v328
        %v1009 = vunpack.c.l.b16 %v329
        %v1010 = vunpack.c.h.b16 %v329
        %v1011 = vunpack.c.l.b16 %v330
        %v1012 = vunpack.c.h.b16 %v330
        %v1013 = vunpack.c.l.b16 %v331
        %v1014 = vunpack.c.h.b16 %v331
        %v1015 = vunpack.c.l.b16 %v332
        %v1016 = vunpack.c.h.b16 %v332
        %v1017 = vunpack.c.l.b16 %v333
        %v1018 = vunpack.c.h.b16 %v333
        %v1019 = vunpack.c.l.b16 %v334
        %v1020 = vunpack.c.h.b16 %v334
        %v1021 = vunpack.c.l.b16 %v335
        %v1022 = vunpack.c.h.b16 %v335
        %v1023 = vunpack.c.l.b16 %v336
        %v1024 = vunpack.c.h.b16 %v336
        %v1025 = vunpack.c.l.b16 %v337
        %v1026 = vunpack.c.h.b16 %v337
        %v1027 = vunpack.c.l.b16 %v338
        %v1028 = vunpack.c.h.b16 %v338
        %v1029 = vunpack.c.l.b16 %v339
        %v1030 = vunpack.c.h.b16 %v339
        %v1031 = vunpack.c.l.b16 %v340
        %v1032 = vunpack.c.h.b16 %v340
        %v1033 = vunpack.c.l.b16 %v341
        %v1034 = vunpack.c.h.b16 %v341
        %v1035 = vunpack.c.l.b16 %v342
        %v1036 = vunpack.c.h.b16 %v342
        %v1037 = vunpack.c.l.b16 %v343
        %v1038 = vunpack.c.h.b16 %v343
        %v1039 = vunpack.c.l.b16 %v344
        %v1040 = vunpack.c.h.b16 %v344
        %v1041 = vunpack.c.l.b16 %v345
        %v1042 = vunpack.c.h.b16 %v345
        %v1043 = vunpack.c.l.b16 %v346
        %v1044 = vunpack.c.h.b16 %v346
        %v1045 = vunpack.c.l.b16 %v347
        %v1046 = vunpack.c.h.b16 %v347
        %v1047 = vunpack.c.l.b16 %v348
        %v1048 = vunpack.c.h.b16 %v348
        %v1049 = vunpack.c.l.b16 %v349
        %v1050 = vunpack.c.h.b16 %v349
        %v1051 = vunpack.c.l.b16 %v350
        %v1052 = vunpack.c.h.b16 %v350
        %v1053 = vunpack.c.l.b16 %v351
        %v1054 = vunpack.c.h.b16 %v351
        %v1055 = vunpack.c.l.b16 %v352
        %v1056 = vunpack.c.h.b16 %v352
        %v1057 = vunpack.c.l.b16 %v353
        %v1058 = vunpack.c.h.b16 %v353
        %v1059 = vunpack.c.l.b16 %v354
        %v1060 = vunpack.c.h.b16 %v354
        %v1061 = vunpack.c.l.b16 %v355
        %v1062 = vunpack.c.h.b16 %v355
        %v1063 = vunpack.c.l.b16 %v356
        %v1064 = vunpack.c.h.b16 %v356
        %v1065 = vunpack.c.l.b16 %v357
        %v1066 = vunpack.c.h.b16 %v357
        %v1067 = vunpack.c.l.b16 %v358
        %v1068 = vunpack.c.h.b16 %v358
        %v1069 = vunpack.c.l.b16 %v359
        %v1070 = vunpack.c.h.b16 %v359
        %v1071 = vunpack.c.l.b16 %v360
        %v1072 = vunpack.c.h.b16 %v360
        %v1073 = vunpack.c.l.b16 %v361
        %v1074 = vunpack.c.h.b16 %v361
        %v1075 = vunpack.c.l.b16 %v362
        %v1076 = vunpack.c.h.b16 %v362
        %v1077 = vunpack.c.l.b16 %v363
        %v1078 = vunpack.c.h.b16 %v363
        %v1079 = vunpack.c.l.b16 %v364
        %v1080 = vunpack.c.h.b16 %v364
        %v1081 = vunpack.c.l.b16 %v365
        %v1082 = vunpack.c.h.b16 %v365
        %v1083 = vunpack.c.l.b16 %v366
        %v1084 = vunpack.c.h.b16 %v366
        %v1085 = vunpack.c.l.b16 %v367
        %v1086 = vunpack.c.h.b16 %v367
        %v1087 = vunpack.c.l.b16 %v368
        %v1088 = vunpack.c.h.b16 %v368
        %v1089 = vunpack.c.l.b16 %v369
        %v1090 = vunpack.c.h.b16 %v369
        %v1091 = vunpack.c.l.b16 %v370
        %v1092 = vunpack.c.h.b16 %v370
        %v1093 = vunpack.c.l.b16 %v371
        %v1094 = vunpack.c.h.b16 %v371
        %v1095 = vunpack.c.l.b16 %v372
        %v1096 = vunpack.c.h.b16 %v372
        %v1097 = vunpack.c.l.b16 %v373
        %v1098 = vunpack.c.h.b16 %v373
        %v1099 = vunpack.c.l.b16 %v374
        %v1100 = vunpack.c.h.b16 %v374
        %v1101 = vunpack.c.l.b16 %v375
        %v1102 = vunpack.c.h.b16 %v375
        %v1103 = vunpack.c.l.b16 %v376
        %v1104 = vunpack.c.h.b16 %v376
        %v1105 = vunpack.c.l.b16 %v377
        %v1106 = vunpack.c.h.b16 %v377
        %v1107 = vunpack.c.l.b16 %v378
        %v1108 = vunpack.c.h.b16 %v378
        %v1109 = vunpack.c.l.b16 %v379
        %v1110 = vunpack.c.h.b16 %v379
        %v1111 = vunpack.c.l.b16 %v380
        %v1112 = vunpack.c.h.b16 %v380
        %v1113 = vunpack.c.l.b16 %v381
        %v1114 = vunpack.c.h.b16 %v381
        %v1115 = vunpack.c.l.b16 %v382
        %v1116 = vunpack.c.h.b16 %v382
        %v1117 = vunpack.c.l.b16 %v383
        %v1118 = vunpack.c.h.b16 %v383
        %v1119 = vunpack.c.l.b16 %v384
        %v1120 = vunpack.c.h.b16 %v384
        %v1121 = vunpack.c.l.b16 %v385
        %v1122 = vunpack.c.h.b16 %v385
        %v1123 = vunpack.c.l.b16 %v386
        %v1124 = vunpack.c.h.b16 %v386
        %v1125 = vunpack.c.l.b16 %v387
        %v1126 = vunpack.c.h.b16 %v387
        %v1127 = vunpack.c.l.b16 %v388
        %v1128 = vunpack.c.h.b16 %v388
        %v1129 = vunpack.c.l.b16 %v389
        %v1130 = vunpack.c.h.b16 %v389
        %v1131 = vunpack.c.l.b16 %v390
        %v1132 = vunpack.c.h.b16 %v390
        %v1133 = vunpack.c.l.b16 %v391
        %v1134 = vunpack.c.h.b16 %v391
        %v1135 = vunpack.c.l.b16 %v392
        %v1136 = vunpack.c.h.b16 %v392
        %v1137 = vunpack.c.l.b16 %v393
        %v1138 = vunpack.c.h.b16 %v393
        %v1139 = vunpack.c.l.b16 %v394
        %v1140 = vunpack.c.h.b16 %v394
        %v1141 = vunpack.c.l.b16 %v395
        %v1142 = vunpack.c.h.b16 %v395
        %v1143 = vunpack.c.l.b16 %v396
        %v1144 = vunpack.c.h.b16 %v396
        %v1145 = vunpack.c.l.b16 %v397
        %v1146 = vunpack.c.h.b16 %v397
        %v1147 = vunpack.c.l.b16 %v398
        %v1148 = vunpack.c.h.b16 %v398
        %v1149 = vunpack.c.l.b16 %v399
        %v1150 = vunpack.c.h.b16 %v399
        %v1151 = vunpack.c.l.b16 %v400
        %v1152 = vunpack.c.h.b16 %v400
        %v1153 = vunpack.c.l.b16 %v401
        %v1154 = vunpack.c.h.b16 %v401
        %v1155 = vunpack.c.l.b16 %v402
        %v1156 = vunpack.c.h.b16 %v402
        %v1157 = vunpack.c.l.b16 %v403
        %v1158 = vunpack.c.h.b16 %v403
        %v1159 = vunpack.c.l.b16 %v404
        %v1160 = vunpack.c.h.b16 %v404
        %v1161 = vunpack.c.l.b16 %v405
        %v1162 = vunpack.c.h.b16 %v405
        %v1163 = vunpack.c.l.b16 %v406
        %v1164 = vunpack.c.h.b16 %v406
        %v1165 = vunpack.c.l.b16 %v407
        %v1166 = vunpack.c.h.b16 %v407
        %v1167 = vunpack.c.l.b16 %v408
        %v1168 = vunpack.c.h.b16 %v408
        %v1169 = vunpack.c.l.b16 %v409
        %v1170 = vunpack.c.h.b16 %v409
        %v1171 = vunpack.c.l.b16 %v410
        %v1172 = vunpack.c.h.b16 %v410
        %v1173 = vunpack.c.l.b16 %v411
        %v1174 = vunpack.c.h.b16 %v411
        %v1175 = vunpack.c.l.b16 %v412
        %v1176 = vunpack.c.h.b16 %v412
        %v1177 = vunpack.c.l.b16 %v413
        %v1178 = vunpack.c.h.b16 %v413
        %v1179 = vunpack.c.l.b16 %v414
        %v1180 = vunpack.c.h.b16 %v414
        %v1181 = vunpack.c.l.b16 %v415
        %v1182 = vunpack.c.h.b16 %v415
        %v1183 = vunpack.c.l.b16 %v416
        %v1184 = vunpack.c.h.b16 %v416
        %v1185 = vunpack.c.l.b16 %v417
        %v1186 = vunpack.c.h.b16 %v417
        %v1187 = vunpack.c.l.b16 %v418
        %v1188 = vunpack.c.h.b16 %v418
        %v1189 = vunpack.c.l.b16 %v419
        %v1190 = vunpack.c.h.b16 %v419
        %v1191 = vunpack.c.l.b16 %v420
        %v1192 = vunpack.c.h.b16 %v420
        %v1193 = vunpack.c.l.b16 %v421
        %v1194 = vunpack.c.h.b16 %v421
        %v1195 = vunpack.c.l.b16 %v422
        %v1196 = vunpack.c.h.b16 %v422
        %v1197 = vunpack.c.l.b16 %v423
        %v1198 = vunpack.c.h.b16 %v423
        %v1199 = vunpack.c.l.b16 %v424
        %v1200 = vunpack.c.h.b16 %v424
        %v1201 = vunpack.c.l.b16 %v425
        %v1202 = vunpack.c.h.b16 %v425
        %v1203 = vunpack.c.l.b16 %v426
        %v1204 = vunpack.c.h.b16 %v426
        %v1205 = vunpack.c.l.b16 %v427
        %v1206 = vunpack.c.h.b16 %v427
        %v1207 = vunpack.c.l.b16 %v428
        %v1208 = vunpack.c.h.b16 %v428
        %v1209 = vunpack.c.l.b16 %v429
        %v1210 = vunpack.c.h.b16 %v429
        %v1211 = vunpack.c.l.b16 %v430
        %v1212 = vunpack.c.h.b16 %v430
        %v1213 = vunpack.c.l.b16 %v431
        %v1214 = vunpack.c.h.b16 %v431
        %v1215 = vunpack.c.l.b16 %v432
        %v1216 = vunpack.c.h.b16 %v432
        %v1217 = vunpack.c.l.b16 %v433
        %v1218 = vunpack.c.h.b16 %v433
        %v1219 = vunpack.c.l.b16 %v434
        %v1220 = vunpack.c.h.b16 %v434
        %v1221 = vunpack.c.l.b16 %v435
        %v1222 = vunpack.c.h.b16 %v435
        %v1223 = vunpack.c.l.b16 %v436
        %v1224 = vunpack.c.h.b16 %v436
        %v1225 = vunpack.c.l.b16 %v437
        %v1226 = vunpack.c.h.b16 %v437
        %v1227 = vunpack.c.l.b16 %v438
        %v1228 = vunpack.c.h.b16 %v438
        %v1229 = vunpack.c.l.b16 %v439
        %v1230 = vunpack.c.h.b16 %v439
        %v1231 = vunpack.c.l.b16 %v440
        %v1232 = vunpack.c.h.b16 %v440
        %v1233 = vunpack.c.l.b16 %v441
        %v1234 = vunpack.c.h.b16 %v441
        %v1235 = vunpack.c.l.b16 %v442
        %v1236 = vunpack.c.h.b16 %v442
        %v1237 = vunpack.c.l.b16 %v443
        %v1238 = vunpack.c.h.b16 %v443
        %v1239 = vunpack.c.l.b16 %v444
        %v1240 = vunpack.c.h.b16 %v444
        %v1241 = vunpack.c.l.b16 %v445
        %v1242 = vunpack.c.h.b16 %v445
        %v1243 = vunpack.c.l.b16 %v446
        %v1244 = vunpack.c.h.b16 %v446
        %v1245 = vunpack.c.l.b16 %v447
        %v1246 = vunpack.c.h.b16 %v447
        %v1247 = vunpack.c.l.b16 %v448
        %v1248 = vunpack.c.h.b16 %v448
        %v1249 = vunpack.c.l.b16 %v449
        %v1250 = vunpack.c.h.b16 %v449
        %v1251 = vunpack.c.l.b16 %v450
        %v1252 = vunpack.c.h.b16 %v450
        %v1253 = vunpack.c.l.b16 %v451
        %v1254 = vunpack.c.h.b16 %v451
        %v1255 = vunpack.c.l.b16 %v452
        %v1256 = vunpack.c.h.b16 %v452
        %v1257 = vunpack.c.l.b16 %v453
        %v1258 = vunpack.c.h.b16 %v453
        %v1259 = vunpack.c.l.b16 %v454
        %v1260 = vunpack.c.h.b16 %v454
        %v1261 = vunpack.c.l.b16 %v455
        %v1262 = vunpack.c.h.b16 %v455
        %v1263 = vunpack.c.l.b16 %v456
        %v1264 = vunpack.c.h.b16 %v456
        %v1265 = vunpack.c.l.b16 %v457
        %v1266 = vunpack.c.h.b16 %v457
        %v1267 = vunpack.c.l.b16 %v458
        %v1268 = vunpack.c.h.b16 %v458
        %v1269 = vunpack.c.l.b16 %v459
        %v1270 = vunpack.c.h.b16 %v459
        %v1271 = vunpack.c.l.b16 %v460
        %v1272 = vunpack.c.h.b16 %v460
        %v1273 = vunpack.c.l.b16 %v461
        %v1274 = vunpack.c.h.b16 %v461
        %v1275 = vunpack.c.l.b16 %v462
        %v1276 = vunpack.c.h.b16 %v462
        %v1277 = vunpack.c.l.b16 %v463
        %v1278 = vunpack.c.h.b16 %v463
        %v1279 = vunpack.c.l.b16 %v464
        %v1280 = vunpack.c.h.b16 %v464
        %v1281 = vunpack.c.l.b16 %v465
        %v1282 = vunpack.c.h.b16 %v465
        %v1283 = vunpack.c.l.b16 %v466
        %v1284 = vunpack.c.h.b16 %v466
        %v1285 = vunpack.c.l.b16 %v467
        %v1286 = vunpack.c.h.b16 %v467
        %v1287 = vunpack.c.l.b16 %v468
        %v1288 = vunpack.c.h.b16 %v468
        %v1289 = vunpack.c.l.b16 %v469
        %v1290 = vunpack.c.h.b16 %v469
        %v1291 = vunpack.c.l.b16 %v470
        %v1292 = vunpack.c.h.b16 %v470
        %v1293 = vunpack.c.l.b16 %v471
        %v1294 = vunpack.c.h.b16 %v471
        %v1295 = vunpack.c.l.b16 %v472
        %v1296 = vunpack.c.h.b16 %v472
        %v1297 = vunpack.c.l.b16 %v473
        %v1298 = vunpack.c.h.b16 %v473
        %v1299 = vunpack.c.l.b16 %v474
        %v1300 = vunpack.c.h.b16 %v474
        %v1301 = vunpack.c.l.b16 %v475
        %v1302 = vunpack.c.h.b16 %v475
        %v1303 = vunpack.c.l.b16 %v476
        %v1304 = vunpack.c.h.b16 %v476
        %v1305 = vunpack.c.l.b16 %v477
        %v1306 = vunpack.c.h.b16 %v477
        %v1307 = vunpack.c.l.b16 %v478
        %v1308 = vunpack.c.h.b16 %v478
        %v1309 = vunpack.c.l.b16 %v479
        %v1310 = vunpack.c.h.b16 %v479
        %v1311 = vunpack.c.l.b16 %v480
        %v1312 = vunpack.c.h.b16 %v480
        %v1313 = vunpack.c.l.b16 %v481
        %v1314 = vunpack.c.h.b16 %v481
        %v1315 = vunpack.c.l.b16 %v482
        %v1316 = vunpack.c.h.b16 %v482
        %v1317 = vunpack.c.l.b16 %v483
        %v1318 = vunpack.c.h.b16 %v483
        %v1319 = vunpack.c.l.b16 %v484
        %v1320 = vunpack.c.h.b16 %v484
        %v1321 = vunpack.c.l.b16 %v485
        %v1322 = vunpack.c.h.b16 %v485
        %v1323 = vunpack.c.l.b16 %v486
        %v1324 = vunpack.c.h.b16 %v486
        %v1325 = vunpack.c.l.b16 %v487
        %v1326 = vunpack.c.h.b16 %v487
        %v1327 = vunpack.c.l.b16 %v488
        %v1328 = vunpack.c.h.b16 %v488
        %v1329 = vunpack.c.l.b16 %v489
        %v1330 = vunpack.c.h.b16 %v489
        %v1331 = vunpack.c.l.b16 %v490
        %v1332 = vunpack.c.h.b16 %v490
        %v1333 = vunpack.c.l.b16 %v491
        %v1334 = vunpack.c.h.b16 %v491
        %v1335 = vunpack.c.l.b16 %v492
        %v1336 = vunpack.c.h.b16 %v492
        %v1337 = vunpack.c.l.b16 %v493
        %v1338 = vunpack.c.h.b16 %v493
        %v1339 = vunpack.c.l.b16 %v494
        %v1340 = vunpack.c.h.b16 %v494
        %v1341 = vunpack.c.l.b16 %v495
        %v1342 = vunpack.c.h.b16 %v495
        %v1343 = vunpack.c.l.b16 %v496
        %v1344 = vunpack.c.h.b16 %v496
        %v1345 = vpack.c.b16 %v837, %v833
        %v1346 = vpack.c.b16 %v838, %v834
        %v1347 = vpack.c.b16 %v839, %v835
        %v1348 = vpack.c.b16 %v840, %v836
        %v1349 = vpack.c.b16 %v845, %v841
        %v1350 = vpack.c.b16 %v846, %v842
        %v1351 = vpack.c.b16 %v847, %v843
        %v1352 = vpack.c.b16 %v848, %v844
        %v1353 = vpack.c.b16 %v853, %v849
        %v1354 = vpack.c.b16 %v854, %v850
        %v1355 = vpack.c.b16 %v855, %v851
        %v1356 = vpack.c.b16 %v856, %v852
        %v1357 = vpack.c.b16 %v861, %v857
        %v1358 = vpack.c.b16 %v862, %v858
        %v1359 = vpack.c.b16 %v863, %v859
        %v1360 = vpack.c.b16 %v864, %v860
        %v1361 = vpack.c.b16 %v869, %v865
        %v1362 = vpack.c.b16 %v870, %v866
        %v1363 = vpack.c.b16 %v871, %v867
        %v1364 = vpack.c.b16 %v872, %v868
        %v1365 = vpack.c.b16 %v877, %v873
        %v1366 = vpack.c.b16 %v878, %v874
        %v1367 = vpack.c.b16 %v879, %v875
        %v1368 = vpack.c.b16 %v880, %v876
        %v1369 = vpack.c.b16 %v885, %v881
        %v1370 = vpack.c.b16 %v886, %v882
        %v1371 = vpack.c.b16 %v887, %v883
        %v1372 = vpack.c.b16 %v888, %v884
        %v1373 = vpack.c.b16 %v893, %v889
        %v1374 = vpack.c.b16 %v894, %v890
        %v1375 = vpack.c.b16 %v895, %v891
        %v1376 = vpack.c.b16 %v896, %v892
        %v1377 = vpack.c.b16 %v901, %v897
        %v1378 = vpack.c.b16 %v902, %v898
        %v1379 = vpack.c.b16 %v903, %v899
        %v1380 = vpack.c.b16 %v904, %v900
        %v1381 = vpack.c.b16 %v909, %v905
        %v1382 = vpack.c.b16 %v910, %v906
        %v1383 = vpack.c.b16 %v911, %v907
        %v1384 = vpack.c.b16 %v912, %v908
        %v1385 = vpack.c.b16 %v917, %v913
        %v1386 = vpack.c.b16 %v918, %v914
        %v1387 = vpack.c.b16 %v919, %v915
        %v1388 = vpack.c.b16 %v920, %v916
        %v1389 = vpack.c.b16 %v925, %v921
        %v1390 = vpack.c.b16 %v926, %v922
        %v1391 = vpack.c.b16 %v927, %v923
        %v1392 = vpack.c.b16 %v928, %v924
        %v1393 = vpack.c.b16 %v933, %v929
        %v1394 = vpack.c.b16 %v934, %v930
        %v1395 = vpack.c.b16 %v935, %v931
        %v1396 = vpack.c.b16 %v936, %v932
        %v1397 = vpack.c.b16 %v941, %v937
        %v1398 = vpack.c.b16 %v942, %v938
        %v1399 = vpack.c.b16 %v943, %v939
        %v1400 = vpack.c.b16 %v944, %v940
        %v1401 = vpack.c.b16 %v949, %v945
        %v1402 = vpack.c.b16 %v950, %v946
        %v1403 = vpack.c.b16 %v951, %v947
        %v1404 = vpack.c.b16 %v952, %v948
        %v1405 = vpack.c.b16 %v957, %v953
        %v1406 = vpack.c.b16 %v958, %v954
        %v1407 = vpack.c.b16 %v959, %v955
        %v1408 = vpack.c.b16 %v960, %v956
        %v1409 = vpack.c.b16 %v965, %v961
        %v1410 = vpack.c.b16 %v966, %v962
        %v1411 = vpack.c.b16 %v967, %v963
        %v1412 = vpack.c.b16 %v968, %v964
        %v1413 = vpack.c.b16 %v973, %v969
        %v1414 = vpack.c.b16 %v974, %v970
        %v1415 = vpack.c.b16 %v975, %v971
        %v1416 = vpack.c.b16 %v976, %v972
        %v1417 = vpack.c.b16 %v981, %v977
        %v1418 = vpack.c.b16 %v982, %v978
        %v1419 = vpack.c.b16 %v983, %v979
        %v1420 = vpack.c.b16 %v984, %v980
        %v1421 = vpack.c.b16 %v989, %v985
        %v1422 = vpack.c.b16 %v990, %v986
        %v1423 = vpack.c.b16 %v991, %v987
        %v1424 = vpack.c.b16 %v992, %v988
        %v1425 = vpack.c.b16 %v997, %v993
        %v1426 = vpack.c.b16 %v998, %v994
        %v1427 = vpack.c.b16 %v999, %v995
        %v1428 = vpack.c.b16 %v1000, %v996
        %v1429 = vpack.c.b16 %v1005, %v1001
        %v1430 = vpack.c.b16 %v1006, %v1002
        %v1431 = vpack.c.b16 %v1007, %v1003
        %v1432 = vpack.c.b16 %v1008, %v1004
        %v1433 = vpack.c.b16 %v1013, %v1009
        %v1434 = vpack.c.b16 %v1014, %v1010
        %v1435 = vpack.c.b16 %v1015, %v1011
        %v1436 = vpack.c.b16 %v1016, %v1012
        %v1437 = vpack.c.b16 %v1021, %v1017
        %v1438 = vpack.c.b16 %v1022, %v1018
        %v1439 = vpack.c.b16 %v1023, %v1019
        %v1440 = vpack.c.b16 %v1024, %v1020
        %v1441 = vpack.c.b16 %v1029, %v1025
        %v1442 = vpack.c.b16 %v1030, %v1026
        %v1443 = vpack.c.b16 %v1031, %v1027
        %v1444 = vpack.c.b16 %v1032, %v1028
        %v1445 = vpack.c.b16 %v1037, %v1033
        %v1446 = vpack.c.b16 %v1038, %v1034
        %v1447 = vpack.c.b16 %v1039, %v1035
        %v1448 = vpack.c.b16 %v1040, %v1036
        %v1449 = vpack.c.b16 %v1045, %v1041
        %v1450 = vpack.c.b16 %v1046, %v1042
        %v1451 = vpack.c.b16 %v1047, %v1043
        %v1452 = vpack.c.b16 %v1048, %v1044
        %v1453 = vpack.c.b16 %v1053, %v1049
        %v1454 = vpack.c.b16 %v1054, %v1050
        %v1455 = vpack.c.b16 %v1055, %v1051
        %v1456 = vpack.c.b16 %v1056, %v1052
        %v1457 = vpack.c.b16 %v1061, %v1057
        %v1458 = vpack.c.b16 %v1062, %v1058
        %v1459 = vpack.c.b16 %v1063, %v1059
        %v1460 = vpack.c.b16 %v1064, %v1060
        %v1461 = vpack.c.b16 %v1069, %v1065
        %v1462 = vpack.c.b16 %v1070, %v1066
        %v1463 = vpack.c.b16 %v1071, %v1067
        %v1464 = vpack.c.b16 %v1072, %v1068
        %v1465 = vpack.c.b16 %v1077, %v1073
        %v1466 = vpack.c.b16 %v1078, %v1074
        %v1467 = vpack.c.b16 %v1079, %v1075
        %v1468 = vpack.c.b16 %v1080, %v1076
        %v1469 = vpack.c.b16 %v1085, %v1081
        %v1470 = vpack.c.b16 %v1086, %v1082
        %v1471 = vpack.c.b16 %v1087, %v1083
        %v1472 = vpack.c.b16 %v1088, %v1084
        %v1473 = vpack.c.b16 %v1093, %v1089
        %v1474 = vpack.c.b16 %v1094, %v1090
        %v1475 = vpack.c.b16 %v1095, %v1091
        %v1476 = vpack.c.b16 %v1096, %v1092
        %v1477 = vpack.c.b16 %v1101, %v1097
        %v1478 = vpack.c.b16 %v1102, %v1098
        %v1479 = vpack.c.b16 %v1103, %v1099
        %v1480 = vpack.c.b16 %v1104, %v1100
        %v1481 = vpack.c.b16 %v1109, %v1105
        %v1482 = vpack.c.b16 %v1110, %v1106
        %v1483 = vpack.c.b16 %v1111, %v1107
        %v1484 = vpack.c.b16 %v1112, %v1108
        %v1485 = vpack.c.b16 %v1117, %v1113
        %v1486 = vpack.c.b16 %v1118, %v1114
        %v1487 = vpack.c.b16 %v1119, %v1115
        %v1488 = vpack.c.b16 %v1120, %v1116
        %v1489 = vpack.c.b16 %v1125, %v1121
        %v1490 = vpack.c.b16 %v1126, %v1122
        %v1491 = vpack.c.b16 %v1127, %v1123
        %v1492 = vpack.c.b16 %v1128, %v1124
        %v1493 = vpack.c.b16 %v1133, %v1129
        %v1494 = vpack.c.b16 %v1134, %v1130
        %v1495 = vpack.c.b16 %v1135, %v1131
        %v1496 = vpack.c.b16 %v1136, %v1132
        %v1497 = vpack.c.b16 %v1141, %v1137
        %v1498 = vpack.c.b16 %v1142, %v1138
        %v1499 = vpack.c.b16 %v1143, %v1139
        %v1500 = vpack.c.b16 %v1144, %v1140
        %v1501 = vpack.c.b16 %v1149, %v1145
        %v1502 = vpack.c.b16 %v1150, %v1146
        %v1503 = vpack.c.b16 %v1151, %v1147
        %v1504 = vpack.c.b16 %v1152, %v1148
        %v1505 = vpack.c.b16 %v1157, %v1153
        %v1506 = vpack.c.b16 %v1158, %v1154
        %v1507 = vpack.c.b16 %v1159, %v1155
        %v1508 = vpack.c.b16 %v1160, %v1156
        %v1509 = vpack.c.b16 %v1165, %v1161
        %v1510 = vpack.c.b16 %v1166, %v1162
        %v1511 = vpack.c.b16 %v1167, %v1163
        %v1512 = vpack.c.b16 %v1168, %v1164
        %v1513 = vpack.c.b16 %v1173, %v1169
        %v1514 = vpack.c.b16 %v1174, %v1170
        %v1515 = vpack.c.b16 %v1175, %v1171
        %v1516 = vpack.c.b16 %v1176, %v1172
        %v1517 = vpack.c.b16 %v1181, %v1177
        %v1518 = vpack.c.b16 %v1182, %v1178
        %v1519 = vpack.c.b16 %v1183, %v1179
        %v1520 = vpack.c.b16 %v1184, %v1180
        %v1521 = vpack.c.b16 %v1189, %v1185
        %v1522 = vpack.c.b16 %v1190, %v1186
        %v1523 = vpack.c.b16 %v1191, %v1187
        %v1524 = vpack.c.b16 %v1192, %v1188
        %v1525 = vpack.c.b16 %v1197, %v1193
        %v1526 = vpack.c.b16 %v1198, %v1194
        %v1527 = vpack.c.b16 %v1199, %v1195
        %v1528 = vpack.c.b16 %v1200, %v1196
        %v1529 = vpack.c.b16 %v1205, %v1201
        %v1530 = vpack.c.b16 %v1206, %v1202
        %v1531 = vpack.c.b16 %v1207, %v1203
        %v1532 = vpack.c.b16 %v1208, %v1204
        %v1533 = vpack.c.b16 %v1213, %v1209
        %v1534 = vpack.c.b16 %v1214, %v1210
        %v1535 = vpack.c.b16 %v1215, %v1211
        %v1536 = vpack.c.b16 %v1216, %v1212
        %v1537 = vpack.c.b16 %v1221, %v1217
        %v1538 = vpack.c.b16 %v1222, %v1218
        %v1539 = vpack.c.b16 %v1223, %v1219
        %v1540 = vpack.c.b16 %v1224, %v1220
        %v1541 = vpack.c.b16 %v1229, %v1225
        %v1542 = vpack.c.b16 %v1230, %v1226
        %v1543 = vpack.c.b16 %v1231, %v1227
        %v1544 = vpack.c.b16 %v1232, %v1228
        %v1545 = vpack.c.b16 %v1237, %v1233
        %v1546 = vpack.c.b16 %v1238, %v1234
        %v1547 = vpack.c.b16 %v1239, %v1235
        %v1548 = vpack.c.b16 %v1240, %v1236
        %v1549 = vpack.c.b16 %v1245, %v1241
        %v1550 = vpack.c.b16 %v1246, %v1242
        %v1551 = vpack.c.b16 %v1247, %v1243
        %v1552 = vpack.c.b16 %v1248, %v1244
        %v1553 = vpack.c.b16 %v1253, %v1249
        %v1554 = vpack.c.b16 %v1254, %v1250
        %v1555 = vpack.c.b16 %v1255, %v1251
        %v1556 = vpack.c.b16 %v1256, %v1252
        %v1557 = vpack.c.b16 %v1261, %v1257
        %v1558 = vpack.c.b16 %v1262, %v1258
        %v1559 = vpack.c.b16 %v1263, %v1259
        %v1560 = vpack.c.b16 %v1264, %v1260
        %v1561 = vpack.c.b16 %v1269, %v1265
        %v1562 = vpack.c.b16 %v1270, %v1266
        %v1563 = vpack.c.b16 %v1271, %v1267
        %v1564 = vpack.c.b16 %v1272, %v1268
        %v1565 = vpack.c.b16 %v1277, %v1273
        %v1566 = vpack.c.b16 %v1278, %v1274
        %v1567 = vpack.c.b16 %v1279, %v1275
        %v1568 = vpack.c.b16 %v1280, %v1276
        %v1569 = vpack.c.b16 %v1285, %v1281
        %v1570 = vpack.c.b16 %v1286, %v1282
        %v1571 = vpack.c.b16 %v1287, %v1283
        %v1572 = vpack.c.b16 %v1288, %v1284
        %v1573 = vpack.c.b16 %v1293, %v1289
        %v1574 = vpack.c.b16 %v1294, %v1290
        %v1575 = vpack.c.b16 %v1295, %v1291
        %v1576 = vpack.c.b16 %v1296, %v1292
        %v1577 = vpack.c.b16 %v1301, %v1297
        %v1578 = vpack.c.b16 %v1302, %v1298
        %v1579 = vpack.c.b16 %v1303, %v1299
        %v1580 = vpack.c.b16 %v1304, %v1300
        %v1581 = vpack.c.b16 %v1309, %v1305
        %v1582 = vpack.c.b16 %v1310, %v1306
        %v1583 = vpack.c.b16 %v1311, %v1307
        %v1584 = vpack.c.b16 %v1312, %v1308
        %v1585 = vpack.c.b16 %v1317, %v1313
        %v1586 = vpack.c.b16 %v1318, %v1314
        %v1587 = vpack.c.b16 %v1319, %v1315
        %v1588 = vpack.c.b16 %v1320, %v1316
        %v1589 = vpack.c.b16 %v1325, %v1321
        %v1590 = vpack.c.b16 %v1326, %v1322
        %v1591 = vpack.c.b16 %v1327, %v1323
        %v1592 = vpack.c.b16 %v1328, %v1324
        %v1593 = vpack.c.b16 %v1333, %v1329
        %v1594 = vpack.c.b16 %v1334, %v1330
        %v1595 = vpack.c.b16 %v1335, %v1331
        %v1596 = vpack.c.b16 %v1336, %v1332
        %v1597 = vpack.c.b16 %v1341, %v1337
        %v1598 = vpack.c.b16 %v1342, %v1338
        %v1599 = vpack.c.b16 %v1343, %v1339
        %v1600 = vpack.c.b16 %v1344, %v1340
        %1857 = vmatprep.subr.bf16.mxu0 %v1374
        %1858 = vmatpush1.bf16.msra.mxu0 %v1373
        %1859 = vmatprep.subr.bf16.mxu0 %v1370
        %1860 = vmatpush1.bf16.msra.mxu0 %v1369
        %1861 = vmatprep.subr.bf16.mxu0 %v1366
        %1862 = vmatpush1.bf16.msra.mxu0 %v1365
        %1863 = vmatprep.subr.bf16.mxu0 %v1362
        %1864 = vmatpush1.bf16.msra.mxu0 %v1361
        %1865 = vmatprep.subr.bf16.mxu0 %v1358
        %1866 = vmatpush1.bf16.msra.mxu0 %v1357
        %1867 = vmatprep.subr.bf16.mxu0 %v1354
        %1868 = vmatpush1.bf16.msra.mxu0 %v1353
        %1869 = vmatprep.subr.bf16.mxu0 %v1350
        %1870 = vmatpush1.bf16.msra.mxu0 %v1349
        %1871 = vmatprep.subr.bf16.mxu0 %v1346
        %1872 = vmatpush1.bf16.msra.mxu0 %v1345
        %1873 = vmatprep.subr.bf16.mxu0 %v1406
        %1874 = vmatpush2.bf16.msra.mxu0 %v1405
        %1875 = vmatprep.subr.bf16.mxu0 %v1402
        %1876 = vmatpush2.bf16.msra.mxu0 %v1401
        %1877 = vmatprep.subr.bf16.mxu0 %v1398
        %1878 = vmatpush2.bf16.msra.mxu0 %v1397
        %1879 = vmatprep.subr.bf16.mxu0 %v1394
        %1880 = vmatpush2.bf16.msra.mxu0 %v1393
        %1881 = vmatprep.subr.bf16.mxu0 %v1390
        %1882 = vmatpush2.bf16.msra.mxu0 %v1389
        %1883 = vmatprep.subr.bf16.mxu0 %v1386
        %1884 = vmatpush2.bf16.msra.mxu0 %v1385
        %1885 = vmatprep.subr.bf16.mxu0 %v1382
        %1886 = vmatpush2.bf16.msra.mxu0 %v1381
        %1887 = vmatprep.subr.bf16.mxu0 %v1378
        %1888 = vmatpush2.bf16.msra.mxu0 %v1377
        %1889 = vmatprep.mubr.bf16.mxu0 %v557
        %1890 = vmatmul.mubr.bf16.gmra.mxu0 %v543
        %v1891 = vpop.f32.mrf.mxu0
        %v1892 = vadd.f32 %v502, %v1891
        %v1893 = vpop.f32.mrf.mxu0
        %v1894 = vadd.f32 %v506, %v1893
        %v1895 = vpop.f32.mrf.mxu0
        %v1896 = vpop.f32.mrf.mxu0
        %1897 = vdwg.mxu0
        %1898 = vmatprep.subr.bf16.mxu0 %v1438
        %1899 = vmatpush1.bf16.msra.mxu0 %v1437
        %1900 = vmatprep.subr.bf16.mxu0 %v1434
        %1901 = vmatpush1.bf16.msra.mxu0 %v1433
        %1902 = vmatprep.subr.bf16.mxu0 %v1430
        %1903 = vmatpush1.bf16.msra.mxu0 %v1429
        %1904 = vmatprep.subr.bf16.mxu0 %v1426
        %1905 = vmatpush1.bf16.msra.mxu0 %v1425
        %1906 = vmatprep.subr.bf16.mxu0 %v1422
        %1907 = vmatpush1.bf16.msra.mxu0 %v1421
        %1908 = vmatprep.subr.bf16.mxu0 %v1418
        %1909 = vmatpush1.bf16.msra.mxu0 %v1417
        %1910 = vmatprep.subr.bf16.mxu0 %v1414
        %1911 = vmatpush1.bf16.msra.mxu0 %v1413
        %1912 = vmatprep.subr.bf16.mxu0 %v1410
        %1913 = vmatpush1.bf16.msra.mxu0 %v1409
        %1914 = vmatprep.subr.bf16.mxu0 %v1470
        %1915 = vmatpush2.bf16.msra.mxu0 %v1469
        %1916 = vmatprep.subr.bf16.mxu0 %v1466
        %1917 = vmatpush2.bf16.msra.mxu0 %v1465
        %1918 = vmatprep.subr.bf16.mxu0 %v1462
        %1919 = vmatpush2.bf16.msra.mxu0 %v1461
        %1920 = vmatprep.subr.bf16.mxu0 %v1458
        %1921 = vmatpush2.bf16.msra.mxu0 %v1457
        %1922 = vmatprep.subr.bf16.mxu0 %v1454
        %1923 = vmatpush2.bf16.msra.mxu0 %v1453
        %1924 = vmatprep.subr.bf16.mxu0 %v1450
        %1925 = vmatpush2.bf16.msra.mxu0 %v1449
        %1926 = vmatprep.subr.bf16.mxu0 %v1446
        %1927 = vmatpush2.bf16.msra.mxu0 %v1445
        %1928 = vmatprep.subr.bf16.mxu0 %v1442
        %1929 = vmatpush2.bf16.msra.mxu0 %v1441
        %1930 = vmatprep.mubr.bf16.mxu0 %v567
        %1931 = vmatmul.mubr.bf16.gmra.mxu0 %v565
        %v1932 = vpop.f32.mrf.mxu0
        %v1933 = vadd.f32 %v1892, %v1932
        %v1934 = vpop.f32.mrf.mxu0
        %v1935 = vadd.f32 %v1894, %v1934
        %v1936 = vpop.f32.mrf.mxu0
        %v1937 = vpop.f32.mrf.mxu0
        %1938 = vdwg.mxu0
        %1939 = vmatprep.subr.bf16.mxu0 %v1502
        %1940 = vmatpush1.bf16.msra.mxu0 %v1501
        %1941 = vmatprep.subr.bf16.mxu0 %v1498
        %1942 = vmatpush1.bf16.msra.mxu0 %v1497
        %1943 = vmatprep.subr.bf16.mxu0 %v1494
        %1944 = vmatpush1.bf16.msra.mxu0 %v1493
        %1945 = vmatprep.subr.bf16.mxu0 %v1490
        %1946 = vmatpush1.bf16.msra.mxu0 %v1489
        %1947 = vmatprep.subr.bf16.mxu0 %v1486
        %1948 = vmatpush1.bf16.msra.mxu0 %v1485
        %1949 = vmatprep.subr.bf16.mxu0 %v1482
        %1950 = vmatpush1.bf16.msra.mxu0 %v1481
        %1951 = vmatprep.subr.bf16.mxu0 %v1478
        %1952 = vmatpush1.bf16.msra.mxu0 %v1477
        %1953 = vmatprep.subr.bf16.mxu0 %v1474
        %1954 = vmatpush1.bf16.msra.mxu0 %v1473
        %1955 = vmatprep.subr.bf16.mxu0 %v1534
        %1956 = vmatpush2.bf16.msra.mxu0 %v1533
        %1957 = vmatprep.subr.bf16.mxu0 %v1530
        %1958 = vmatpush2.bf16.msra.mxu0 %v1529
        %1959 = vmatprep.subr.bf16.mxu0 %v1526
        %1960 = vmatpush2.bf16.msra.mxu0 %v1525
        %1961 = vmatprep.subr.bf16.mxu0 %v1522
        %1962 = vmatpush2.bf16.msra.mxu0 %v1521
        %1963 = vmatprep.subr.bf16.mxu0 %v1518
        %1964 = vmatpush2.bf16.msra.mxu0 %v1517
        %1965 = vmatprep.subr.bf16.mxu0 %v1514
        %1966 = vmatpush2.bf16.msra.mxu0 %v1513
        %1967 = vmatprep.subr.bf16.mxu0 %v1510
        %1968 = vmatpush2.bf16.msra.mxu0 %v1509
        %1969 = vmatprep.subr.bf16.mxu0 %v1506
        %1970 = vmatpush2.bf16.msra.mxu0 %v1505
        %1971 = vmatprep.mubr.bf16.mxu0 %v564
        %1972 = vmatmul.mubr.bf16.gmra.mxu0 %v550
        %v1973 = vpop.f32.mrf.mxu0
        %v1974 = vadd.f32 %v1933, %v1973
        %v1975 = vpop.f32.mrf.mxu0
        %v1976 = vadd.f32 %v1935, %v1975
        %v1977 = vpop.f32.mrf.mxu0
        %v1978 = vpop.f32.mrf.mxu0
        %1979 = vdwg.mxu0
        %1980 = vmatprep.subr.bf16.mxu0 %v1566
        %1981 = vmatpush1.bf16.msra.mxu0 %v1565
        %1982 = vmatprep.subr.bf16.mxu0 %v1562
        %1983 = vmatpush1.bf16.msra.mxu0 %v1561
        %1984 = vmatprep.subr.bf16.mxu0 %v1558
        %1985 = vmatpush1.bf16.msra.mxu0 %v1557
        %1986 = vmatprep.subr.bf16.mxu0 %v1554
        %1987 = vmatpush1.bf16.msra.mxu0 %v1553
        %1988 = vmatprep.subr.bf16.mxu0 %v1550
        %1989 = vmatpush1.bf16.msra.mxu0 %v1549
        %1990 = vmatprep.subr.bf16.mxu0 %v1546
        %1991 = vmatpush1.bf16.msra.mxu0 %v1545
        %1992 = vmatprep.subr.bf16.mxu0 %v1542
        %1993 = vmatpush1.bf16.msra.mxu0 %v1541
        %1994 = vmatprep.subr.bf16.mxu0 %v1538
        %1995 = vmatpush1.bf16.msra.mxu0 %v1537
        %1996 = vmatprep.subr.bf16.mxu0 %v1598
        %1997 = vmatpush2.bf16.msra.mxu0 %v1597
        %1998 = vmatprep.subr.bf16.mxu0 %v1594
        %1999 = vmatpush2.bf16.msra.mxu0 %v1593
        %2000 = vmatprep.subr.bf16.mxu0 %v1590
        %2001 = vmatpush2.bf16.msra.mxu0 %v1589
        %2002 = vmatprep.subr.bf16.mxu0 %v1586
        %2003 = vmatpush2.bf16.msra.mxu0 %v1585
        %2004 = vmatprep.subr.bf16.mxu0 %v1582
        %2005 = vmatpush2.bf16.msra.mxu0 %v1581
        %2006 = vmatprep.subr.bf16.mxu0 %v1578
        %2007 = vmatpush2.bf16.msra.mxu0 %v1577
        %2008 = vmatprep.subr.bf16.mxu0 %v1574
        %2009 = vmatpush2.bf16.msra.mxu0 %v1573
        %2010 = vmatprep.subr.bf16.mxu0 %v1570
        %2011 = vmatpush2.bf16.msra.mxu0 %v1569
        %2012 = vmatprep.mubr.bf16.mxu0 %v568
        %2013 = vmatmul.mubr.bf16.gmra.mxu0 %v566
        %v2014 = vpop.f32.mrf.mxu0
        %v2015 = vadd.f32 %v1974, %v2014
        %v2016 = vpop.f32.mrf.mxu0
        %v2017 = vadd.f32 %v1976, %v2016
        %v2018 = vpop.f32.mrf.mxu0
        %v2019 = vpop.f32.mrf.mxu0
        %2020 = vdwg.mxu0
        %2021 = vmatprep.subr.bf16.mxu0 %v1376
        %2022 = vmatpush1.bf16.msra.mxu0 %v1375
        %2023 = vmatprep.subr.bf16.mxu0 %v1372
        %2024 = vmatpush1.bf16.msra.mxu0 %v1371
        %2025 = vmatprep.subr.bf16.mxu0 %v1368
        %2026 = vmatpush1.bf16.msra.mxu0 %v1367
        %2027 = vmatprep.subr.bf16.mxu0 %v1364
        %2028 = vmatpush1.bf16.msra.mxu0 %v1363
        %2029 = vmatprep.subr.bf16.mxu0 %v1360
        %2030 = vmatpush1.bf16.msra.mxu0 %v1359
        %2031 = vmatprep.subr.bf16.mxu0 %v1356
        %2032 = vmatpush1.bf16.msra.mxu0 %v1355
        %2033 = vmatprep.subr.bf16.mxu0 %v1352
        %2034 = vmatpush1.bf16.msra.mxu0 %v1351
        %2035 = vmatprep.subr.bf16.mxu0 %v1348
        %2036 = vmatpush1.bf16.msra.mxu0 %v1347
        %2037 = vmatprep.subr.bf16.mxu0 %v1408
        %2038 = vmatpush2.bf16.msra.mxu0 %v1407
        %2039 = vmatprep.subr.bf16.mxu0 %v1404
        %2040 = vmatpush2.bf16.msra.mxu0 %v1403
        %2041 = vmatprep.subr.bf16.mxu0 %v1400
        %2042 = vmatpush2.bf16.msra.mxu0 %v1399
        %2043 = vmatprep.subr.bf16.mxu0 %v1396
        %2044 = vmatpush2.bf16.msra.mxu0 %v1395
        %2045 = vmatprep.subr.bf16.mxu0 %v1392
        %2046 = vmatpush2.bf16.msra.mxu0 %v1391
        %2047 = vmatprep.subr.bf16.mxu0 %v1388
        %2048 = vmatpush2.bf16.msra.mxu0 %v1387
        %2049 = vmatprep.subr.bf16.mxu0 %v1384
        %2050 = vmatpush2.bf16.msra.mxu0 %v1383
        %2051 = vmatprep.subr.bf16.mxu0 %v1380
        %2052 = vmatpush2.bf16.msra.mxu0 %v1379
        %2053 = vmatprep.mubr.bf16.mxu0 %v557
        %2054 = vmatmul.mubr.bf16.gmra.mxu0 %v543
        %v2055 = vpop.f32.mrf.mxu0
        %v2056 = vadd.f32 %v510, %v2055
        %v2057 = vpop.f32.mrf.mxu0
        %v2058 = vadd.f32 %v514, %v2057
        %v2059 = vpop.f32.mrf.mxu0
        %v2060 = vpop.f32.mrf.mxu0
        %2061 = vdwg.mxu0
        %2062 = vmatprep.subr.bf16.mxu0 %v1440
        %2063 = vmatpush1.bf16.msra.mxu0 %v1439
        %2064 = vmatprep.subr.bf16.mxu0 %v1436
        %2065 = vmatpush1.bf16.msra.mxu0 %v1435
        %2066 = vmatprep.subr.bf16.mxu0 %v1432
        %2067 = vmatpush1.bf16.msra.mxu0 %v1431
        %2068 = vmatprep.subr.bf16.mxu0 %v1428
        %2069 = vmatpush1.bf16.msra.mxu0 %v1427
        %2070 = vmatprep.subr.bf16.mxu0 %v1424
        %2071 = vmatpush1.bf16.msra.mxu0 %v1423
        %2072 = vmatprep.subr.bf16.mxu0 %v1420
        %2073 = vmatpush1.bf16.msra.mxu0 %v1419
        %2074 = vmatprep.subr.bf16.mxu0 %v1416
        %2075 = vmatpush1.bf16.msra.mxu0 %v1415
        %2076 = vmatprep.subr.bf16.mxu0 %v1412
        %2077 = vmatpush1.bf16.msra.mxu0 %v1411
        %2078 = vmatprep.subr.bf16.mxu0 %v1472
        %2079 = vmatpush2.bf16.msra.mxu0 %v1471
        %2080 = vmatprep.subr.bf16.mxu0 %v1468
        %2081 = vmatpush2.bf16.msra.mxu0 %v1467
        %2082 = vmatprep.subr.bf16.mxu0 %v1464
        %2083 = vmatpush2.bf16.msra.mxu0 %v1463
        %2084 = vmatprep.subr.bf16.mxu0 %v1460
        %2085 = vmatpush2.bf16.msra.mxu0 %v1459
        %2086 = vmatprep.subr.bf16.mxu0 %v1456
        %2087 = vmatpush2.bf16.msra.mxu0 %v1455
        %2088 = vmatprep.subr.bf16.mxu0 %v1452
        %2089 = vmatpush2.bf16.msra.mxu0 %v1451
        %2090 = vmatprep.subr.bf16.mxu0 %v1448
        %2091 = vmatpush2.bf16.msra.mxu0 %v1447
        %2092 = vmatprep.subr.bf16.mxu0 %v1444
        %2093 = vmatpush2.bf16.msra.mxu0 %v1443
        %2094 = vmatprep.mubr.bf16.mxu0 %v567
        %2095 = vmatmul.mubr.bf16.gmra.mxu0 %v565
        %v2096 = vpop.f32.mrf.mxu0
        %v2097 = vadd.f32 %v2056, %v2096
        %v2098 = vpop.f32.mrf.mxu0
        %v2099 = vadd.f32 %v2058, %v2098
        %v2100 = vpop.f32.mrf.mxu0
        %v2101 = vpop.f32.mrf.mxu0
        %2102 = vdwg.mxu0
        %2103 = vmatprep.subr.bf16.mxu0 %v1504
        %2104 = vmatpush1.bf16.msra.mxu0 %v1503
        %2105 = vmatprep.subr.bf16.mxu0 %v1500
        %2106 = vmatpush1.bf16.msra.mxu0 %v1499
        %2107 = vmatprep.subr.bf16.mxu0 %v1496
        %2108 = vmatpush1.bf16.msra.mxu0 %v1495
        %2109 = vmatprep.subr.bf16.mxu0 %v1492
        %2110 = vmatpush1.bf16.msra.mxu0 %v1491
        %2111 = vmatprep.subr.bf16.mxu0 %v1488
        %2112 = vmatpush1.bf16.msra.mxu0 %v1487
        %2113 = vmatprep.subr.bf16.mxu0 %v1484
        %2114 = vmatpush1.bf16.msra.mxu0 %v1483
        %2115 = vmatprep.subr.bf16.mxu0 %v1480
        %2116 = vmatpush1.bf16.msra.mxu0 %v1479
        %2117 = vmatprep.subr.bf16.mxu0 %v1476
        %2118 = vmatpush1.bf16.msra.mxu0 %v1475
        %2119 = vmatprep.subr.bf16.mxu0 %v1536
        %2120 = vmatpush2.bf16.msra.mxu0 %v1535
        %2121 = vmatprep.subr.bf16.mxu0 %v1532
        %2122 = vmatpush2.bf16.msra.mxu0 %v1531
        %2123 = vmatprep.subr.bf16.mxu0 %v1528
        %2124 = vmatpush2.bf16.msra.mxu0 %v1527
        %2125 = vmatprep.subr.bf16.mxu0 %v1524
        %2126 = vmatpush2.bf16.msra.mxu0 %v1523
        %2127 = vmatprep.subr.bf16.mxu0 %v1520
        %2128 = vmatpush2.bf16.msra.mxu0 %v1519
        %2129 = vmatprep.subr.bf16.mxu0 %v1516
        %2130 = vmatpush2.bf16.msra.mxu0 %v1515
        %2131 = vmatprep.subr.bf16.mxu0 %v1512
        %2132 = vmatpush2.bf16.msra.mxu0 %v1511
        %2133 = vmatprep.subr.bf16.mxu0 %v1508
        %2134 = vmatpush2.bf16.msra.mxu0 %v1507
        %2135 = vmatprep.mubr.bf16.mxu0 %v564
        %2136 = vmatmul.mubr.bf16.gmra.mxu0 %v550
        %v2137 = vpop.f32.mrf.mxu0
        %v2138 = vadd.f32 %v2097, %v2137
        %v2139 = vpop.f32.mrf.mxu0
        %v2140 = vadd.f32 %v2099, %v2139
        %v2141 = vpop.f32.mrf.mxu0
        %v2142 = vpop.f32.mrf.mxu0
        %2143 = vdwg.mxu0
        %2144 = vmatprep.subr.bf16.mxu0 %v1568
        %2145 = vmatpush1.bf16.msra.mxu0 %v1567
        %2146 = vmatprep.subr.bf16.mxu0 %v1564
        %2147 = vmatpush1.bf16.msra.mxu0 %v1563
        %2148 = vmatprep.subr.bf16.mxu0 %v1560
        %2149 = vmatpush1.bf16.msra.mxu0 %v1559
        %2150 = vmatprep.subr.bf16.mxu0 %v1556
        %2151 = vmatpush1.bf16.msra.mxu0 %v1555
        %2152 = vmatprep.subr.bf16.mxu0 %v1552
        %2153 = vmatpush1.bf16.msra.mxu0 %v1551
        %2154 = vmatprep.subr.bf16.mxu0 %v1548
        %2155 = vmatpush1.bf16.msra.mxu0 %v1547
        %2156 = vmatprep.subr.bf16.mxu0 %v1544
        %2157 = vmatpush1.bf16.msra.mxu0 %v1543
        %2158 = vmatprep.subr.bf16.mxu0 %v1540
        %2159 = vmatpush1.bf16.msra.mxu0 %v1539
        %2160 = vmatprep.subr.bf16.mxu0 %v1600
        %2161 = vmatpush2.bf16.msra.mxu0 %v1599
        %2162 = vmatprep.subr.bf16.mxu0 %v1596
        %2163 = vmatpush2.bf16.msra.mxu0 %v1595
        %2164 = vmatprep.subr.bf16.mxu0 %v1592
        %2165 = vmatpush2.bf16.msra.mxu0 %v1591
        %2166 = vmatprep.subr.bf16.mxu0 %v1588
        %2167 = vmatpush2.bf16.msra.mxu0 %v1587
        %2168 = vmatprep.subr.bf16.mxu0 %v1584
        %2169 = vmatpush2.bf16.msra.mxu0 %v1583
        %2170 = vmatprep.subr.bf16.mxu0 %v1580
        %2171 = vmatpush2.bf16.msra.mxu0 %v1579
        %2172 = vmatprep.subr.bf16.mxu0 %v1576
        %2173 = vmatpush2.bf16.msra.mxu0 %v1575
        %2174 = vmatprep.subr.bf16.mxu0 %v1572
        %2175 = vmatpush2.bf16.msra.mxu0 %v1571
        %2176 = vmatprep.mubr.bf16.mxu0 %v568
        %2177 = vmatmul.mubr.bf16.gmra.mxu0 %v566
        %v2178 = vpop.f32.mrf.mxu0
        %v2179 = vadd.f32 %v2138, %v2178
        %v2180 = vpop.f32.mrf.mxu0
        %v2181 = vadd.f32 %v2140, %v2180
        %v2182 = vpop.f32.mrf.mxu0
        %v2183 = vpop.f32.mrf.mxu0
        %2184 = vdwg.mxu0
        %v2189 = vcombine.low %v2015, %v2017
        %v2190 = vcombine.low %v2179, %v2181
        %v2192 = vunpack.c.l.s4 1983009808
        %v2193 = vunpack.c.0.s8 %v2192
        %v2194 = vlaneseq
        %v2195 = vshrl.u32 %v2194, 7
        %v2196 = vsub.s32 %v2193, %v2195
        %v2197 = vrot.slane %v2189, %v2196
        %v2199 = vunpack.c.l.s4 1983009808
        %v2200 = vunpack.c.0.s8 %v2199
        %v2201 = vlaneseq
        %v2202 = vshrl.u32 %v2201, 7
        %v2203 = vsub.s32 %v2200, %v2202
        %v2204 = vrot.slane %v2190, %v2203
        %v2205 = vcombine.low %v2197, %v2204
        %2207 = vst [vmem:[%s236] sm:$0xff] %v2205
        %s2208 = sand.u32 %s102, 1
        %s2209 = scalar_lea.sflag [#allocation4], %s2208
        %s2210 = sand.u32 %s102, 1
        %s2211 = smul.addr %s2210, 8
        %s2212 = scalar_lea.vmem [#allocation8], %s2211
        // Predicated region
        $region45: #{tpu_custom_call.1} parent=31 // pred_check
          %p2213 = pneg %p112
        $region46: #{tpu_custom_call.1} parent=31 // pred_check_branch
          %2215 = sbr.rel (%p2213) target = $region48
        $region47: #{tpu_custom_call.1} parent=31 // pred_region
          %s2216 = smul.u32 4, %s21
          %s2218 = ssub.s32 128, 128
          %2219 = vsyncadd %s2209, %s2218
          %s2220 = smul.addr %s2216, 32
          %s2221 = scalar_lea.hbm %s3, %s2220
          %s2223 = sshll.u32 %s2212, 4
          %s2224 = int_to_ptr.vmem [resolvable:$true] %s2223
          %2226 = dma.vmem_to_hbm [thread:$0]  %s2224, 128, %s2221, %s2209
        $region48: #{tpu_custom_call.1} parent=31 // pred_fallthru
          _
      $region32: #{tpu_custom_call.1} parent=5 // pred_fallthru
        _
      %p2227 = scmp.le.s32.totalorder 2, %s16
      // Predicated region
      $region49: #{tpu_custom_call.1} parent=5 // pred_check
        %p2228 = pneg %p2227
      $region50: #{tpu_custom_call.1} parent=5 // pred_check_branch
        %2230 = sbr.rel (%p2228) target = $region52
      $region51: #{tpu_custom_call.1} parent=5 // pred_region
        %s2231 = ssub.s32 %s16, 2
        // Predicated region
        $region53: #{tpu_custom_call.1} parent=51 // pred_check
          %p2232 = pneg %p118
        $region54: #{tpu_custom_call.1} parent=51 // pred_check_branch
          %2234 = sbr.rel (%p2232) target = $region56
        $region55: #{tpu_custom_call.1} parent=51 // pred_region
          %s2235 = sand.u32 %s103, 1
          %s2236 = scalar_lea.sflag [#allocation4], %s2235
          %s2237 = sand.u32 %s103, 1
          %s2238 = smul.addr %s2237, 8
          %s2239 = scalar_lea.vmem [#allocation8], %s2238
          %2240 = dma.done %s2236, 128
        $region56: #{tpu_custom_call.1} parent=51 // pred_fallthru
          _
      $region52: #{tpu_custom_call.1} parent=5 // pred_fallthru
        _
    $region6: #{tpu_custom_call.1} parent=1 // loop_footer
      %s20 = sadd.s32 1, %s16
    $region7: #{tpu_custom_call.1} parent=1 // loop_footer_branch
      %15 = sbr.rel target = $region3
    $region8: #{tpu_custom_call.1} parent=1 // loop_exit
      _
    %2241 = vsyncpa [#allocation3], 1
    %s2242 = scalar_lea.sflag [#allocation3], 1
    %2243 = vsyncpa %s2242, 1
    %2244 = vsyncpa [#allocation6], 1
    %s2245 = scalar_lea.sflag [#allocation6], 1
    %2246 = vsyncpa %s2245, 1
    %2247 = vsyncpa [#allocation4], 1
    %s2248 = scalar_lea.sflag [#allocation4], 1
    %2249 = vsyncpa %s2248, 1

</llo_original>
